<compile_context>
chip_gen: v5e
topology: v5e:2x2
jax: 0.10.0
libtpu: 0.0.40
codegen_flags: <defaults>
</compile_context>

<pallas_src>
import functools

import jax
import jax.numpy as jnp
from jax.experimental import pallas as pl
from jax.experimental.pallas import tpu as pltpu

LN_EPS = 1e-5  # torch.nn.LayerNorm default


def _round_up(n, m):
    return (n + m - 1) // m * m


# ----------------------------------------------------------------------------
# Kernel
# ----------------------------------------------------------------------------
def generated_model_kernel(x_ref, w_ref, v_ref, out_ref, *, seg, out_seg):
    """One grid step: (rows_t, seg) packed activations -> (rows_t, out_seg) packed heads.

    seg     = PACK * hidden       (lane width of the packed activations)
    out_seg = PACK * 2*out_size   (lane width of the packed [pos|unc] heads)
    Weights are block-diagonal (PACK independent 32-wide problems per lane row), so
    one dense matmul processes PACK batch rows at full lane / MXU occupancy.
    """
    f32 = jnp.float32
    L, OL = seg, out_seg

    # -- resident packed weight slab (possibly pre-cast to bf16 on the host) --
    w1 = w_ref[:, 0 * L:1 * L]            # block-diag layer-1 weight
    w2 = w_ref[:, 1 * L:2 * L]            # block-diag layer-2 weight
    wa = w_ref[:, 2 * L:3 * L]            # block-diag folded attention  wv @ wo
    mln = w_ref[:, 3 * L:4 * L]           # block-diag ones/H (segmented-mean operator)
    wh = w_ref[:, 4 * L:4 * L + OL]       # block-diag fused head  [wout | wunc]

    # -- resident bias / LN / mask slab (always f32) --
    b1 = v_ref[:, 0 * L:1 * L]
    g1 = v_ref[:, 1 * L:2 * L]
    be1 = v_ref[:, 2 * L:3 * L]
    b2 = v_ref[:, 3 * L:4 * L]
    baf = v_ref[:, 4 * L:5 * L]           # folded attention bias  bv @ wo + bo
    ga = v_ref[:, 5 * L:6 * L]
    ba = v_ref[:, 6 * L:7 * L]
    bh = v_ref[:, 7 * L:7 * L + OL]       # fused head bias [bout | bunc]
    unc = v_ref[:, 7 * L + OL:7 * L + 2 * OL]   # 1.0 on uncertainty lanes, else 0.0

    mm_dtype = w1.dtype                   # matmul-operand dtype chosen at pack time

    def mm(a, b):
        return jnp.dot(a.astype(mm_dtype), b, preferred_element_type=f32)

    def seg_layernorm(h, gamma, beta):
        # per-32-lane-segment LayerNorm; segmented mean via MXU (block-diag ones/H)
        mu = mm(h, mln)
        var = mm(h * h, mln) - mu * mu    # E[h^2] - mu^2 (single fused pass)
        return (h - mu) * jax.lax.rsqrt(var + LN_EPS) * gamma + beta

    x = x_ref[...].astype(f32)

    # ---- hidden layer 1: Linear -> +residual (sizes match) -> LayerNorm -> ReLU
    h = mm(x, w1) + b1 + x
    residual = h
    h = seg_layernorm(h, g1, be1)
    h = jnp.maximum(h, 0.0)

    # ---- hidden layer 2: Linear -> +residual -> Tanh
    h = jnp.tanh(mm(h, w2) + b2 + residual)

    # ---- MultiheadAttention with seq_len==1: softmax == 1 exactly -> one folded matmul
    attn = mm(h, wa) + baf
    h = seg_layernorm(h + attn, ga, ba)

    # ---- fused heads: [position | sigmoid(uncertainty)] per 2*O-lane segment
    heads = mm(h, wh) + bh
    out = heads + unc * (jax.nn.sigmoid(heads) - heads)   # branch-free lane select
    out_ref[...] = out.astype(out_ref.dtype)


# ----------------------------------------------------------------------------
# Host-side parameter packing (done once)
# ----------------------------------------------------------------------------
def pack_params(p, *, pack=8, matmul_dtype=jnp.float32):
    """Pack all parameters into one weight slab and one bias/LN/mask slab.

    pack: batch rows per lane row (8 -> 256-lane, matches v6e/v7x 256-wide MXU;
          use 4 on v5e to match its 128x128 MXU tiles).
    matmul_dtype: dtype of the weight slab (bf16 on v6e/v7x halves MXU passes and
          removes any per-step in-kernel cast; biases/LN params stay f32).
    """
    f32 = jnp.float32
    H = p["w1"].shape[1]
    O = p["wout"].shape[1]
    P = pack

    # seq_len==1 attention fold: softmax over one key == 1, only V/O projections act.
    wa = p["wv"].astype(f32) @ p["wo"].astype(f32)                           # (H, H)
    baf = p["bv"].astype(f32) @ p["wo"].astype(f32) + p["bo"].astype(f32)    # (1, H)

    # head fusion
    wh = jnp.concatenate([p["wout"], p["wunc"]], axis=1).astype(f32)         # (H, 2O)
    bh = jnp.concatenate([p["bout"], p["bunc"]], axis=1).astype(f32)         # (1, 2O)

    eye = jnp.eye(P, dtype=f32)
    bd = lambda w: jnp.kron(eye, w.astype(f32))              # block-diagonal replicate
    m_ln = jnp.kron(eye, jnp.full((H, H), 1.0 / H, f32))     # segmented-mean operator

    w_slab = jnp.concatenate([bd(p["w1"]), bd(p["w2"]), bd(wa), m_ln, bd(wh)], axis=1)
    w_slab = jnp.pad(
        w_slab, ((0, 0), (0, _round_up(w_slab.shape[1], 128) - w_slab.shape[1])))
    w_slab = w_slab.astype(matmul_dtype)                     # host-side pre-cast

    tile = lambda b: jnp.tile(b.astype(f32), (1, P))
    unc_mask = jnp.tile(
        jnp.concatenate([jnp.zeros((1, O), f32), jnp.ones((1, O), f32)], axis=1), (1, P))
    v_slab = jnp.concatenate(
        [tile(p["b1"]), tile(p["g1"]), tile(p["be1"]), tile(p["b2"]),
         tile(baf), tile(p["ga"]), tile(p["ba"]), tile(bh), unc_mask], axis=1)
    v_slab = jnp.pad(
        v_slab, ((0, 0), (0, _round_up(v_slab.shape[1], 128) - v_slab.shape[1])))
    return w_slab, v_slab, H, O


# ----------------------------------------------------------------------------
# Wrapper
# ----------------------------------------------------------------------------
def generated_model_forward(x, w_slab, v_slab, *, pack, hidden, out_size, tb=2048):
    """Forward pass.  `tb` = batch rows per grid step (big default: per-step grid
    overhead ~0.35us dominates small tiles; VMEM cost is tiny on every generation)."""
    B, d_in = x.shape
    P = pack
    assert d_in == hidden, "packed kernel targets input_size == first hidden width (32)"
    L, OL = P * hidden, P * 2 * out_size

    row_align = P * 8                                   # 8 sublanes of packed rows
    bp = _round_up(B, row_align)
    tb = max(row_align, min(_round_up(tb, row_align), bp))
    if bp // tb < 2 and bp >= 2 * row_align:            # >=2 steps for v7x megacore
        tb = _round_up(bp // 2, row_align)
    bp = _round_up(bp, tb)
    if bp != B:
        x = jnp.pad(x, ((0, bp - B), (0, 0)))

    rows, rows_t = bp // P, tb // P
    xp = x.reshape(rows, L)                             # P batch rows per lane row

    kernel = functools.partial(generated_model_kernel, seg=L, out_seg=OL)

    flops = int(2 * rows * L * (7 * L + OL))            # 7 LxL matmuls + head
    transcendentals = int(rows * (3 * L + OL))          # tanh, sigmoid, rsqrt-ish
    bytes_accessed = int(4 * rows * (L + OL)
                         + int(w_slab.size) * w_slab.dtype.itemsize
                         + 4 * int(v_slab.size))

    out = pl.pallas_call(
        kernel,
        out_shape=jax.ShapeDtypeStruct((rows, OL), jnp.float32),
        grid=(bp // tb,),
        in_specs=[
            pl.BlockSpec((rows_t, L), lambda i: (i, 0)),      # activations: streamed
            pl.BlockSpec(w_slab.shape, lambda i: (0, 0)),     # weight slab: resident
            pl.BlockSpec(v_slab.shape, lambda i: (0, 0)),     # bias/LN/mask: resident
        ],
        out_specs=pl.BlockSpec((rows_t, OL), lambda i: (i, 0)),  # lane-dense writeback
        compiler_params=pltpu.CompilerParams(dimension_semantics=("parallel",)),
        cost_estimate=pl.CostEstimate(flops=flops, transcendentals=transcendentals,
                                      bytes_accessed=bytes_accessed),
    )(xp, w_slab, v_slab)

    out = out.reshape(bp, 2 * out_size)[:B]             # un-pack lane-dense heads
    return out[:, :out_size], out[:, out_size:]


# ----------------------------------------------------------------------------
# Deterministic synthetic weights + pure-JAX reference (mirrors the PyTorch forward)
# ----------------------------------------------------------------------------
def init_params(key, input_size=32, hidden=32, output_size=8):
    ks = jax.random.split(key, 12)

    def lin(kw, kb, fan_in, fan_out):
        w = jax.random.normal(kw, (fan_in, fan_out), jnp.float32) / jnp.sqrt(
            jnp.float32(fan_in))
        b = 0.01 * jax.random.normal(kb, (1, fan_out), jnp.float32)
        return w, b

    w1, b1 = lin(ks[0], ks[1], input_size, hidden)
    w2, b2 = lin(ks[2], ks[3], hidden, hidden)
    wv, bv = lin(ks[4], ks[5], hidden, hidden)      # MHA V in-projection slice
    wo, bo = lin(ks[6], ks[7], hidden, hidden)      # MHA out_proj
    wout, bout = lin(ks[8], ks[9], hidden, output_size)
    wunc, bunc = lin(ks[10], ks[11], hidden, output_size)

    ones = jnp.ones((1, hidden), jnp.float32)
    zeros = jnp.zeros((1, hidden), jnp.float32)
    return dict(
        w1=w1, b1=b1, g1=ones, be1=zeros,
        w2=w2, b2=b2,
        wv=wv, bv=bv, wo=wo, bo=bo, ga=ones, ba=zeros,
        wout=wout, bout=bout, wunc=wunc, bunc=bunc,
    )


def _layernorm_ref(h, gamma, beta):
    mu = jnp.mean(h, axis=-1, keepdims=True)
    var = jnp.mean((h - mu) * (h - mu), axis=-1, keepdims=True)   # biased, like torch
    return (h - mu) * jax.lax.rsqrt(var + LN_EPS) * gamma + beta


def reference_forward(x, p):
    """Pure-JAX reference mirroring the (unfused) PyTorch forward."""
    residual = x
    h = x @ p["w1"] + p["b1"]
    h = h + residual
    residual = h
    h = _layernorm_ref(h, p["g1"], p["be1"])
    h = jnp.maximum(h, 0.0)
    h = h @ p["w2"] + p["b2"]
    h = h + residual
    h = jnp.tanh(h)
    v = h @ p["wv"] + p["bv"]
    attn = v @ p["wo"] + p["bo"]          # softmax over 1 key == 1 exactly
    h = _layernorm_ref(h + attn, p["ga"], p["ba"])
    pos = h @ p["wout"] + p["bout"]
    unc = jax.nn.sigmoid(h @ p["wunc"] + p["bunc"])
    return pos, unc


if __name__ == "__main__":
    key = jax.random.PRNGKey(0)
    kx, kp = jax.random.split(key)
    B, D_IN, HIDDEN, D_OUT = 256, 32, 32, 8
    PACK = 8   # 8 batch rows / 256 lanes per packed row (v6e/v7x MXU width); 4 on v5e

    x = jax.random.normal(kx, (B, D_IN), jnp.float32)
    params = init_params(kp, D_IN, HIDDEN, D_OUT)
    ref_pos, ref_unc = reference_forward(x, params)

    # f32 weight slab: tight check against the unfused reference (>=2 grid steps).
    w_slab, v_slab, H, O = pack_params(params, pack=PACK)
    pos, unc = generated_model_forward(x, w_slab, v_slab, pack=PACK, hidden=H, out_size=O)
    jax.block_until_ready((pos, unc))
    assert pos.shape == (B, D_OUT) and unc.shape == (B, D_OUT)
    assert jnp.allclose(pos, ref_pos, atol=2e-4, rtol=2e-4)
    assert jnp.allclose(unc, ref_unc, atol=2e-4, rtol=2e-4)

    # bf16 matmul operands (v6e/v7x production path): weights pre-cast on the host,
    # accumulation + all elementwise/LN math stay f32 -> loose tolerance only.
    w_bf, v_bf, _, _ = pack_params(params, pack=PACK, matmul_dtype=jnp.bfloat16)
    pos_bf, unc_bf = generated_model_forward(x, w_bf, v_bf, pack=PACK, hidden=H, out_size=O)
    jax.block_until_ready((pos_bf, unc_bf))
    assert jnp.allclose(pos_bf, ref_pos, atol=1e-1, rtol=1e-1)
    assert jnp.allclose(unc_bf, ref_unc, atol=1e-1, rtol=1e-1)

    # TODO(synk): dropout layers from the config space are omitted (inference/eval
    # semantics); the attention fold assumes seq_len == 1 (softmax over one key == 1).
    print("KERNEL_OK")
</pallas_src>

<mosaic_0001>
module attributes {stable_mosaic.version = 11 : i64} {
  func.func @generated_model_kernel(%arg0: i32, %arg1: memref<16x256xf32, #tpu.memory_space<vmem>>, %arg2: memref<256x1152xf32, #tpu.memory_space<vmem>>, %arg3: memref<1x2048xf32, #tpu.memory_space<vmem>>, %arg4: memref<16x128xf32, #tpu.memory_space<vmem>>) attributes {dimension_semantics = [#tpu.dimension_semantics<parallel>], iteration_bounds = array<i64: 2>, scalar_prefetch = 0 : i64, scratch_operands = 0 : i64, tpu.core_type = #tpu.core_type<tc>, window_params = [{transform_indices = @transform_0, window_bounds = array<i64: 16, 256>}, {pipeline_mode = #tpu.pipeline_mode<synchronous>, transform_indices = @transform_1, window_bounds = array<i64: 256, 1152>}, {pipeline_mode = #tpu.pipeline_mode<synchronous>, transform_indices = @transform_2, window_bounds = array<i64: 1, 2048>}, {transform_indices = @transform_3, window_bounds = array<i64: 16, 128>}]} {
    %c0 = arith.constant 0 : index
    %c0_0 = arith.constant 0 : index
    %0 = vector.load %arg2[%c0, %c0_0] : memref<256x1152xf32, #tpu.memory_space<vmem>>, vector<256x256xf32>
    %c0_1 = arith.constant 0 : index
    %c256 = arith.constant 256 : index
    %1 = vector.load %arg2[%c0_1, %c256] : memref<256x1152xf32, #tpu.memory_space<vmem>>, vector<256x256xf32>
    %c0_2 = arith.constant 0 : index
    %c512 = arith.constant 512 : index
    %2 = vector.load %arg2[%c0_2, %c512] : memref<256x1152xf32, #tpu.memory_space<vmem>>, vector<256x256xf32>
    %c0_3 = arith.constant 0 : index
    %c768 = arith.constant 768 : index
    %3 = vector.load %arg2[%c0_3, %c768] : memref<256x1152xf32, #tpu.memory_space<vmem>>, vector<256x256xf32>
    %c0_4 = arith.constant 0 : index
    %c1024 = arith.constant 1024 : index
    %4 = vector.load %arg2[%c0_4, %c1024] : memref<256x1152xf32, #tpu.memory_space<vmem>>, vector<256x128xf32>
    %c0_5 = arith.constant 0 : index
    %c0_6 = arith.constant 0 : index
    %5 = vector.load %arg3[%c0_5, %c0_6] : memref<1x2048xf32, #tpu.memory_space<vmem>>, vector<1x256xf32>
    %c0_7 = arith.constant 0 : index
    %c256_8 = arith.constant 256 : index
    %6 = vector.load %arg3[%c0_7, %c256_8] : memref<1x2048xf32, #tpu.memory_space<vmem>>, vector<1x256xf32>
    %c0_9 = arith.constant 0 : index
    %c512_10 = arith.constant 512 : index
    %7 = vector.load %arg3[%c0_9, %c512_10] : memref<1x2048xf32, #tpu.memory_space<vmem>>, vector<1x256xf32>
    %c0_11 = arith.constant 0 : index
    %c768_12 = arith.constant 768 : index
    %8 = vector.load %arg3[%c0_11, %c768_12] : memref<1x2048xf32, #tpu.memory_space<vmem>>, vector<1x256xf32>
    %c0_13 = arith.constant 0 : index
    %c1024_14 = arith.constant 1024 : index
    %9 = vector.load %arg3[%c0_13, %c1024_14] : memref<1x2048xf32, #tpu.memory_space<vmem>>, vector<1x256xf32>
    %c0_15 = arith.constant 0 : index
    %c1280 = arith.constant 1280 : index
    %10 = vector.load %arg3[%c0_15, %c1280] : memref<1x2048xf32, #tpu.memory_space<vmem>>, vector<1x256xf32>
    %c0_16 = arith.constant 0 : index
    %c1536 = arith.constant 1536 : index
    %11 = vector.load %arg3[%c0_16, %c1536] : memref<1x2048xf32, #tpu.memory_space<vmem>>, vector<1x256xf32>
    %c0_17 = arith.constant 0 : index
    %c1792 = arith.constant 1792 : index
    %12 = vector.load %arg3[%c0_17, %c1792] : memref<1x2048xf32, #tpu.memory_space<vmem>>, vector<1x128xf32>
    %c0_18 = arith.constant 0 : index
    %c1920 = arith.constant 1920 : index
    %13 = vector.load %arg3[%c0_18, %c1920] : memref<1x2048xf32, #tpu.memory_space<vmem>>, vector<1x128xf32>
    %c0_19 = arith.constant 0 : index
    %c0_20 = arith.constant 0 : index
    %14 = vector.load %arg1[%c0_19, %c0_20] : memref<16x256xf32, #tpu.memory_space<vmem>>, vector<16x256xf32>
    %cst = arith.constant dense<0.000000e+00> : vector<16x256xf32>
    %15 = tpu.matmul %14, %0, %cst {dimension_numbers = #tpu.dot_dimension_numbers<[1], [0], [0], [1], [0, 0, 1, 1], [], []>} : vector<16x256xf32>, vector<256x256xf32>, vector<16x256xf32> -> vector<16x256xf32>
    %16 = vector.broadcast %5 : vector<1x256xf32> to vector<16x256xf32>
    %17 = arith.addf %15, %16 : vector<16x256xf32>
    %18 = arith.addf %17, %14 : vector<16x256xf32>
    %cst_21 = arith.constant dense<0.000000e+00> : vector<16x256xf32>
    %19 = tpu.matmul %18, %3, %cst_21 {dimension_numbers = #tpu.dot_dimension_numbers<[1], [0], [0], [1], [0, 0, 1, 1], [], []>} : vector<16x256xf32>, vector<256x256xf32>, vector<16x256xf32> -> vector<16x256xf32>
    %20 = arith.mulf %18, %18 : vector<16x256xf32>
    %cst_22 = arith.constant dense<0.000000e+00> : vector<16x256xf32>
    %21 = tpu.matmul %20, %3, %cst_22 {dimension_numbers = #tpu.dot_dimension_numbers<[1], [0], [0], [1], [0, 0, 1, 1], [], []>} : vector<16x256xf32>, vector<256x256xf32>, vector<16x256xf32> -> vector<16x256xf32>
    %22 = arith.mulf %19, %19 : vector<16x256xf32>
    %23 = arith.subf %21, %22 : vector<16x256xf32>
    %24 = arith.subf %18, %19 : vector<16x256xf32>
    %cst_23 = arith.constant 9.99999974E-6 : f32
    %25 = vector.broadcast %cst_23 : f32 to vector<16x256xf32>
    %26 = arith.addf %23, %25 : vector<16x256xf32>
    %27 = math.rsqrt %26 : vector<16x256xf32>
    %28 = arith.mulf %24, %27 : vector<16x256xf32>
    %29 = vector.broadcast %6 : vector<1x256xf32> to vector<16x256xf32>
    %30 = arith.mulf %28, %29 : vector<16x256xf32>
    %31 = vector.broadcast %7 : vector<1x256xf32> to vector<16x256xf32>
    %32 = arith.addf %30, %31 : vector<16x256xf32>
    %cst_24 = arith.constant 0.000000e+00 : f32
    %33 = vector.broadcast %cst_24 : f32 to vector<16x256xf32>
    %34 = arith.maximumf %32, %33 : vector<16x256xf32>
    %cst_25 = arith.constant dense<0.000000e+00> : vector<16x256xf32>
    %35 = tpu.matmul %34, %1, %cst_25 {dimension_numbers = #tpu.dot_dimension_numbers<[1], [0], [0], [1], [0, 0, 1, 1], [], []>} : vector<16x256xf32>, vector<256x256xf32>, vector<16x256xf32> -> vector<16x256xf32>
    %36 = vector.broadcast %8 : vector<1x256xf32> to vector<16x256xf32>
    %37 = arith.addf %35, %36 : vector<16x256xf32>
    %38 = arith.addf %37, %18 : vector<16x256xf32>
    %39 = math.tanh %38 : vector<16x256xf32>
    %cst_26 = arith.constant dense<0.000000e+00> : vector<16x256xf32>
    %40 = tpu.matmul %39, %2, %cst_26 {dimension_numbers = #tpu.dot_dimension_numbers<[1], [0], [0], [1], [0, 0, 1, 1], [], []>} : vector<16x256xf32>, vector<256x256xf32>, vector<16x256xf32> -> vector<16x256xf32>
    %41 = vector.broadcast %9 : vector<1x256xf32> to vector<16x256xf32>
    %42 = arith.addf %40, %41 : vector<16x256xf32>
    %43 = arith.addf %39, %42 : vector<16x256xf32>
    %cst_27 = arith.constant dense<0.000000e+00> : vector<16x256xf32>
    %44 = tpu.matmul %43, %3, %cst_27 {dimension_numbers = #tpu.dot_dimension_numbers<[1], [0], [0], [1], [0, 0, 1, 1], [], []>} : vector<16x256xf32>, vector<256x256xf32>, vector<16x256xf32> -> vector<16x256xf32>
    %45 = arith.mulf %43, %43 : vector<16x256xf32>
    %cst_28 = arith.constant dense<0.000000e+00> : vector<16x256xf32>
    %46 = tpu.matmul %45, %3, %cst_28 {dimension_numbers = #tpu.dot_dimension_numbers<[1], [0], [0], [1], [0, 0, 1, 1], [], []>} : vector<16x256xf32>, vector<256x256xf32>, vector<16x256xf32> -> vector<16x256xf32>
    %47 = arith.mulf %44, %44 : vector<16x256xf32>
    %48 = arith.subf %46, %47 : vector<16x256xf32>
    %49 = arith.subf %43, %44 : vector<16x256xf32>
    %cst_29 = arith.constant 9.99999974E-6 : f32
    %50 = vector.broadcast %cst_29 : f32 to vector<16x256xf32>
    %51 = arith.addf %48, %50 : vector<16x256xf32>
    %52 = math.rsqrt %51 : vector<16x256xf32>
    %53 = arith.mulf %49, %52 : vector<16x256xf32>
    %54 = vector.broadcast %10 : vector<1x256xf32> to vector<16x256xf32>
    %55 = arith.mulf %53, %54 : vector<16x256xf32>
    %56 = vector.broadcast %11 : vector<1x256xf32> to vector<16x256xf32>
    %57 = arith.addf %55, %56 : vector<16x256xf32>
    %cst_30 = arith.constant dense<0.000000e+00> : vector<16x128xf32>
    %58 = tpu.matmul %57, %4, %cst_30 {dimension_numbers = #tpu.dot_dimension_numbers<[1], [0], [0], [1], [0, 0, 1, 1], [], []>} : vector<16x256xf32>, vector<256x128xf32>, vector<16x128xf32> -> vector<16x128xf32>
    %59 = vector.broadcast %12 : vector<1x128xf32> to vector<16x128xf32>
    %60 = arith.addf %58, %59 : vector<16x128xf32>
    %61 = arith.negf %60 : vector<16x128xf32>
    %62 = math.exp %61 : vector<16x128xf32>
    %cst_31 = arith.constant 1.000000e+00 : f32
    %63 = vector.broadcast %cst_31 : f32 to vector<16x128xf32>
    %64 = arith.addf %63, %62 : vector<16x128xf32>
    %65 = arith.divf %63, %64 : vector<16x128xf32>
    %66 = arith.subf %65, %60 : vector<16x128xf32>
    %67 = vector.broadcast %13 : vector<1x128xf32> to vector<16x128xf32>
    %68 = arith.mulf %67, %66 : vector<16x128xf32>
    %69 = arith.addf %60, %68 : vector<16x128xf32>
    %c0_32 = arith.constant 0 : index
    %c0_33 = arith.constant 0 : index
    %70 = vector.load %arg4[%c0_32, %c0_33] : memref<16x128xf32, #tpu.memory_space<vmem>>, vector<16x128xf32>
    tpu.vector_store %arg4[%c0_32, %c0_33], %69 {strides = array<i32>} : memref<16x128xf32, #tpu.memory_space<vmem>>, vector<16x128xf32>,
    return
  }
  func.func @transform_0(%arg0: i32) -> (i32, i32) {
    %c0_i32 = arith.constant 0 : i32
    %c0_i32_0 = arith.constant 0 : i32
    return %arg0, %c0_i32 : i32, i32
  }
  func.func @transform_1(%arg0: i32) -> (i32, i32) {
    %c0_i32 = arith.constant 0 : i32
    %c0_i32_0 = arith.constant 0 : i32
    %c0_i32_1 = arith.constant 0 : i32
    return %c0_i32, %c0_i32_0 : i32, i32
  }
  func.func @transform_2(%arg0: i32) -> (i32, i32) {
    %c0_i32 = arith.constant 0 : i32
    %c0_i32_0 = arith.constant 0 : i32
    %c0_i32_1 = arith.constant 0 : i32
    return %c0_i32, %c0_i32_0 : i32, i32
  }
  func.func @transform_3(%arg0: i32) -> (i32, i32) {
    %c0_i32 = arith.constant 0 : i32
    %c0_i32_0 = arith.constant 0 : i32
    return %arg0, %c0_i32 : i32, i32
  }
}

</mosaic_0001>

<llo_original>
// kernel: tpu_custom_call.1
$region0: #{tpu_custom_call.1}
  #allocation0 [shape = 'u32[]', space=smem, size = 0x4, offset = 0x4, fixed_abs, tag = 'smem constant byte address 0x4 - core index']
  #allocation1 [shape = 'u32[72,128]{1,0:T(1,128)}', space=vmem, size = 0x9000, scoped, tag = 'internal scratch']
  %s0 = inlined_call_operand.hbm [shape: f32[32,256], index: 0, kind: input, shape index: {}]
  %s1 = inlined_call_operand.hbm [shape: f32[256,1152], index: 1, kind: input, shape index: {}]
  %s2 = inlined_call_operand.hbm [shape: f32[1,2048], index: 2, kind: input, shape index: {}]
  %s3 = inlined_call_operand.hbm [shape: f32[32,128], index: 3, kind: output, shape index: {}]
  %s4 = sld [smem:[#allocation0]]
  $region57: #{tpu_custom_call.1} parent=0
    _
  %s6 = ssub.s32 1, %s4
  %s7 = scalar_select 0, %s6, %s4
  $region1: #{tpu_custom_call.1} parent=0
    #allocation2 [shape = 'u8[32768]{0}', space=vmem, size = 0x8000, scoped, tag = 'input window, operand 0']
    #allocation3 [shape = 's32[2]{0}', space=sflag, size = 0x8, scoped, tag = 'scoped memory for tpu_custom_call.1']
    #allocation4 [shape = 's32[2]{0}', space=sflag, size = 0x8, scoped, tag = 'scoped memory for tpu_custom_call.1']
    #allocation5 [shape = 'u8[1179648]{0}', space=vmem, size = 0x120000, scoped, tag = 'input window, operand 1, single buffered']
    #allocation6 [shape = 's32[1]{0}', space=sflag, size = 0x4, scoped, tag = 'scoped memory for tpu_custom_call.1']
    #allocation7 [shape = 'u8[8192]{0}', space=vmem, size = 0x2000, scoped, tag = 'input window, operand 2, single buffered']
    #allocation8 [shape = 'u8[16384]{0}', space=vmem, size = 0x4000, scoped, tag = 'output window, operand 0']
    %8 = vsyncpa [#allocation3], 0
    %s9 = scalar_lea.sflag [#allocation3], 1
    %10 = vsyncpa %s9, 0
    %11 = vsyncpa [#allocation6], 0
    %12 = vsyncpa [#allocation4], 0
    %s13 = scalar_lea.sflag [#allocation4], 1
    %14 = vsyncpa %s13, 0
    loop: start=0, step=1, limit=4
    $region2: #{tpu_custom_call.1} parent=1 // loop_pre_header
      _
    $region3: #{tpu_custom_call.1} parent=1 // loop_header
      %s16 = sphi 0, %s20
      %p17 = scmp.ge.s32.totalorder %s16, 4
      %s26 = sphi 0, %s28
      %s29 = sphi 0, %s26
      %s30 = sphi 0, %s29
      %s46 = sphi 0, %s30
      %s50 = sphi 0, %s50
      %s52 = sphi 0, %s50
      %s53 = sphi 0, %s52
      %s67 = sphi 0, %s53
      %s71 = sphi 0, %s71
      %s73 = sphi 0, %s71
      %s74 = sphi 0, %s73
      %s88 = sphi 0, %s74
      %s94 = sphi 0, %s96
      %s97 = sphi 0, %s94
      %s98 = sphi 0, %s97
      %s114 = sphi 0, %s98
    $region4: #{tpu_custom_call.1} parent=1 // loop_header_branch
      %19 = sbr.rel (%p17) target = $region8
    $region5: #{tpu_custom_call.1} parent=1 // loop_body
      %s21 = ssub.s32 %s16, 1
      %s22 = ssub.s32 %s16, 2
      %s23 = sadd.s32 %s16, 1
      %s24 = ssub.s32 %s16, %s23
      %p25 = scmp.eq.s32.totalorder %s24, 0
      %s27 = sadd.s32 %s26, 1
      %s28 = scalar_select %p25, %s26, %s27
      %p31 = pneg %p25
      %p32 = scmp.eq.s32.totalorder %s16, 1
      %p33 = por %p31, %p32
      %p34 = scmp.ne.s32.totalorder %s26, %s29
      %p35 = scmp.eq.s32.totalorder %s16, 0
      %p36 = por %p34, %p35
      %p37 = scmp.ne.s32.totalorder %s26, %s29
      %p38 = scmp.eq.s32.totalorder %s21, 1
      %p39 = por %p37, %p38
      %p40 = scmp.ne.s32.totalorder %s29, %s30
      %p41 = scmp.eq.s32.totalorder %s21, 0
      %p42 = por %p40, %p41
      %p43 = scmp.ne.s32.totalorder %s29, %s30
      %p44 = scmp.eq.s32.totalorder %s22, 1
      %p45 = por %p43, %p44
      %p47 = scmp.ne.s32.totalorder %s30, %s46
      %p48 = scmp.eq.s32.totalorder %s22, 0
      %p49 = por %p47, %p48
      %s51 = sadd.s32 %s50, 1
      %p54 = scmp.eq.s32.totalorder %s16, 1
      %p55 = scmp.ne.s32.totalorder %s50, %s52
      %p56 = scmp.eq.s32.totalorder %s16, 0
      %p57 = por %p55, %p56
      %p58 = scmp.ne.s32.totalorder %s50, %s52
      %p59 = scmp.eq.s32.totalorder %s21, 1
      %p60 = por %p58, %p59
      %p61 = scmp.ne.s32.totalorder %s52, %s53
      %p62 = scmp.eq.s32.totalorder %s21, 0
      %p63 = por %p61, %p62
      %p64 = scmp.ne.s32.totalorder %s52, %s53
      %p65 = scmp.eq.s32.totalorder %s22, 1
      %p66 = por %p64, %p65
      %p68 = scmp.ne.s32.totalorder %s53, %s67
      %p69 = scmp.eq.s32.totalorder %s22, 0
      %p70 = por %p68, %p69
      %s72 = sadd.s32 %s71, 1
      %p75 = scmp.eq.s32.totalorder %s16, 1
      %p76 = scmp.ne.s32.totalorder %s71, %s73
      %p77 = scmp.eq.s32.totalorder %s16, 0
      %p78 = por %p76, %p77
      %p79 = scmp.ne.s32.totalorder %s71, %s73
      %p80 = scmp.eq.s32.totalorder %s21, 1
      %p81 = por %p79, %p80
      %p82 = scmp.ne.s32.totalorder %s73, %s74
      %p83 = scmp.eq.s32.totalorder %s21, 0
      %p84 = por %p82, %p83
      %p85 = scmp.ne.s32.totalorder %s73, %s74
      %p86 = scmp.eq.s32.totalorder %s22, 1
      %p87 = por %p85, %p86
      %p89 = scmp.ne.s32.totalorder %s74, %s88
      %p90 = scmp.eq.s32.totalorder %s22, 0
      %p91 = por %p89, %p90
      %s92 = ssub.s32 %s16, %s23
      %p93 = scmp.eq.s32.totalorder %s92, 0
      %s95 = sadd.s32 %s94, 1
      %s96 = scalar_select %p93, %s94, %s95
      %p99 = pneg %p93
      %p100 = scmp.eq.s32.totalorder %s16, 1
      %p101 = por %p99, %p100
      %p102 = scmp.ne.s32.totalorder %s94, %s97
      %p103 = scmp.eq.s32.totalorder %s16, 0
      %p104 = por %p102, %p103
      %p105 = scmp.ne.s32.totalorder %s94, %s97
      %p106 = scmp.eq.s32.totalorder %s21, 1
      %p107 = por %p105, %p106
      %p108 = scmp.ne.s32.totalorder %s97, %s98
      %p109 = scmp.eq.s32.totalorder %s21, 0
      %p110 = por %p108, %p109
      %p111 = scmp.ne.s32.totalorder %s97, %s98
      %p112 = scmp.eq.s32.totalorder %s22, 1
      %p113 = por %p111, %p112
      %p115 = scmp.ne.s32.totalorder %s98, %s114
      %p116 = scmp.eq.s32.totalorder %s22, 0
      %p117 = por %p115, %p116
      %p118 = scmp.le.s32.totalorder 1, %s16
      %p119 = scmp.lt.s32.totalorder %s16, 3
      %p120 = pnand %p118, %p119
      %p121 = pneg %p120
      // Predicated region
      $region9: #{tpu_custom_call.1} parent=5 // pred_check
        _
      $region10: #{tpu_custom_call.1} parent=5 // pred_check_branch
        %123 = sbr.rel (%p120) target = $region12
      $region11: #{tpu_custom_call.1} parent=5 // pred_region
        %s124 = ssub.s32 %s16, 1
        // Predicated region
        $region13: #{tpu_custom_call.1} parent=11 // pred_check
          %p125 = pneg %p63
        $region14: #{tpu_custom_call.1} parent=11 // pred_check_branch
          %127 = sbr.rel (%p125) target = $region16
        $region15: #{tpu_custom_call.1} parent=11 // pred_region
          %129 = vsyncadd [#allocation6], 0
          %s130 = sshll.u32 %s1, 4
          %s131 = int_to_ptr.hbm [resolvable:$true] %s130
          %s132 = sshll.u32 [#allocation5], 4
          %s133 = int_to_ptr.vmem [resolvable:$true] %s132
          %138 = dma.hbm_to_vmem [thread:$0]  %s131, 36864, %s133, [#allocation6], 1152, 1152, 72
        $region16: #{tpu_custom_call.1} parent=11 // pred_fallthru
          _
        // Predicated region
        $region17: #{tpu_custom_call.1} parent=11 // pred_check
          %p139 = pneg %p84
        $region18: #{tpu_custom_call.1} parent=11 // pred_check_branch
          %141 = sbr.rel (%p139) target = $region20
        $region19: #{tpu_custom_call.1} parent=11 // pred_region
          %143 = vsyncadd [#allocation6], 0
          %s145 = sshll.u32 %s2, 4
          %s146 = int_to_ptr.hbm [resolvable:$true] %s145
          %s147 = sshll.u32 [#allocation7], 4
          %s148 = int_to_ptr.vmem [resolvable:$true] %s147
          %150 = dma.hbm_to_vmem [thread:$0]  %s146, 256, %s148, [#allocation6]
        $region20: #{tpu_custom_call.1} parent=11 // pred_fallthru
          _
      $region12: #{tpu_custom_call.1} parent=5 // pred_fallthru
        _
      %p151 = scmp.lt.s32.totalorder %s16, 2
      // Predicated region
      $region21: #{tpu_custom_call.1} parent=5 // pred_check
        %p152 = pneg %p151
      $region22: #{tpu_custom_call.1} parent=5 // pred_check_branch
        %154 = sbr.rel (%p152) target = $region24
      $region23: #{tpu_custom_call.1} parent=5 // pred_region
        // Predicated region
        $region25: #{tpu_custom_call.1} parent=23 // pred_check
          %p155 = pneg %p36
        $region26: #{tpu_custom_call.1} parent=23 // pred_check_branch
          %157 = sbr.rel (%p155) target = $region28
        $region27: #{tpu_custom_call.1} parent=23 // pred_region
          %s158 = sand.u32 %s26, 1
          %s159 = scalar_lea.sflag [#allocation3], %s158
          %s160 = sand.u32 %s26, 1
          %s161 = smul.addr %s160, 32
          %s162 = scalar_lea.vmem [#allocation2], %s161
          %s163 = smul.u32 2, %s16
          %165 = vsyncadd %s159, 0
          %s166 = smul.addr %s163, 2
          %s167 = smul.addr %s166, 8
          %s168 = scalar_lea.hbm %s0, %s167
          %s169 = sshll.u32 %s168, 4
          %s170 = int_to_ptr.hbm [resolvable:$true] %s169
          %s171 = sshll.u32 %s162, 4
          %s172 = int_to_ptr.vmem [resolvable:$true] %s171
          %177 = dma.hbm_to_vmem [thread:$0]  %s170, 512, %s172, %s159, 256, 256, 16
        $region28: #{tpu_custom_call.1} parent=23 // pred_fallthru
          _
      $region24: #{tpu_custom_call.1} parent=5 // pred_fallthru
        _
      %p178 = scmp.le.s32.totalorder 1, %s16
      %p179 = scmp.lt.s32.totalorder %s16, 3
      %p180 = pnand %p178, %p179
      %p181 = pneg %p180
      // Predicated region
      $region29: #{tpu_custom_call.1} parent=5 // pred_check
        _
      $region30: #{tpu_custom_call.1} parent=5 // pred_check_branch
        %183 = sbr.rel (%p180) target = $region32
      $region31: #{tpu_custom_call.1} parent=5 // pred_region
        %s184 = ssub.s32 %s16, 1
        %s185 = sand.u32 %s29, 1
        %s186 = scalar_lea.sflag [#allocation3], %s185
        %s187 = sand.u32 %s29, 1
        %s188 = smul.addr %s187, 32
        %s189 = scalar_lea.vmem [#allocation2], %s188
        // Predicated region
        $region33: #{tpu_custom_call.1} parent=31 // pred_check
          %p190 = pneg %p42
        $region34: #{tpu_custom_call.1} parent=31 // pred_check_branch
          %192 = sbr.rel (%p190) target = $region36
        $region35: #{tpu_custom_call.1} parent=31 // pred_region
          %194 = dma.done %s186, 512
        $region36: #{tpu_custom_call.1} parent=31 // pred_fallthru
          _
        // Predicated region
        $region37: #{tpu_custom_call.1} parent=31 // pred_check
          %p195 = pneg %p63
        $region38: #{tpu_custom_call.1} parent=31 // pred_check_branch
          %197 = sbr.rel (%p195) target = $region40
        $region39: #{tpu_custom_call.1} parent=31 // pred_region
          %199 = dma.done [#allocation6], 36864
        $region40: #{tpu_custom_call.1} parent=31 // pred_fallthru
          _
        // Predicated region
        $region41: #{tpu_custom_call.1} parent=31 // pred_check
          %p200 = pneg %p84
        $region42: #{tpu_custom_call.1} parent=31 // pred_check_branch
          %202 = sbr.rel (%p200) target = $region44
        $region43: #{tpu_custom_call.1} parent=31 // pred_region
          %204 = dma.done [#allocation6], 256
        $region44: #{tpu_custom_call.1} parent=31 // pred_fallthru
          _
        %s205 = sand.u32 %s29, 1
        %s206 = scalar_lea.sflag [#allocation3], %s205
        %s207 = sand.u32 %s29, 1
        %s208 = smul.addr %s207, 32
        %s209 = scalar_lea.vmem [#allocation2], %s208
        %p210 = pneg %p42
        %p211 = pneg %p39
        %p212 = pneg %p63
        %p213 = pneg %p60
        %p214 = pneg %p84
        %p215 = pneg %p81
        %p216 = pneg %p110
        %p217 = pneg %p107
        %s218 = sand.u32 %s97, 1
        %s219 = scalar_lea.sflag [#allocation4], %s218
        %s220 = sand.u32 %s97, 1
        %s221 = smul.addr %s220, 16
        %s222 = scalar_lea.vmem [#allocation8], %s221
        %s223 = smul.u32 2, %s21
        %s224 = smul.u32 2, %s21
        %v225 = vld [vmem:[#allocation5] sm:$0xff]
        %v226 = vld [vmem:[#allocation5 + $0x8] sm:$0xff]
        %v227 = vld [vmem:[#allocation5 + $0x48] sm:$0xff]
        %v228 = vld [vmem:[#allocation5 + $0x50] sm:$0xff]
        %v229 = vld [vmem:[#allocation5 + $0x90] sm:$0xff]
        %v230 = vld [vmem:[#allocation5 + $0x98] sm:$0xff]
        %v231 = vld [vmem:[#allocation5 + $0xd8] sm:$0xff]
        %v232 = vld [vmem:[#allocation5 + $0xe0] sm:$0xff]
        %v233 = vld [vmem:[#allocation5 + $0x120] sm:$0xff]
        %v234 = vld [vmem:[#allocation5 + $0x128] sm:$0xff]
        %v235 = vld [vmem:[#allocation5 + $0x168] sm:$0xff]
        %v236 = vld [vmem:[#allocation5 + $0x170] sm:$0xff]
        %v237 = vld [vmem:[#allocation5 + $0x1b0] sm:$0xff]
        %v238 = vld [vmem:[#allocation5 + $0x1b8] sm:$0xff]
        %v239 = vld [vmem:[#allocation5 + $0x1f8] sm:$0xff]
        %v240 = vld [vmem:[#allocation5 + $0x200] sm:$0xff]
        %v241 = vld [vmem:[#allocation5 + $0x240] sm:$0xff]
        %v242 = vld [vmem:[#allocation5 + $0x248] sm:$0xff]
        %v243 = vld [vmem:[#allocation5 + $0x288] sm:$0xff]
        %v244 = vld [vmem:[#allocation5 + $0x290] sm:$0xff]
        %v245 = vld [vmem:[#allocation5 + $0x2d0] sm:$0xff]
        %v246 = vld [vmem:[#allocation5 + $0x2d8] sm:$0xff]
        %v247 = vld [vmem:[#allocation5 + $0x318] sm:$0xff]
        %v248 = vld [vmem:[#allocation5 + $0x320] sm:$0xff]
        %v249 = vld [vmem:[#allocation5 + $0x360] sm:$0xff]
        %v250 = vld [vmem:[#allocation5 + $0x368] sm:$0xff]
        %v251 = vld [vmem:[#allocation5 + $0x3a8] sm:$0xff]
        %v252 = vld [vmem:[#allocation5 + $0x3b0] sm:$0xff]
        %v253 = vld [vmem:[#allocation5 + $0x3f0] sm:$0xff]
        %v254 = vld [vmem:[#allocation5 + $0x3f8] sm:$0xff]
        %v255 = vld [vmem:[#allocation5 + $0x438] sm:$0xff]
        %v256 = vld [vmem:[#allocation5 + $0x440] sm:$0xff]
        %v257 = vld [vmem:[#allocation5 + $0x480] sm:$0xff]
        %v258 = vld [vmem:[#allocation5 + $0x488] sm:$0xff]
        %v259 = vld [vmem:[#allocation5 + $0x4c8] sm:$0xff]
        %v260 = vld [vmem:[#allocation5 + $0x4d0] sm:$0xff]
        %v261 = vld [vmem:[#allocation5 + $0x510] sm:$0xff]
        %v262 = vld [vmem:[#allocation5 + $0x518] sm:$0xff]
        %v263 = vld [vmem:[#allocation5 + $0x558] sm:$0xff]
        %v264 = vld [vmem:[#allocation5 + $0x560] sm:$0xff]
        %v265 = vld [vmem:[#allocation5 + $0x5a0] sm:$0xff]
        %v266 = vld [vmem:[#allocation5 + $0x5a8] sm:$0xff]
        %v267 = vld [vmem:[#allocation5 + $0x5e8] sm:$0xff]
        %v268 = vld [vmem:[#allocation5 + $0x5f0] sm:$0xff]
        %v269 = vld [vmem:[#allocation5 + $0x630] sm:$0xff]
        %v270 = vld [vmem:[#allocation5 + $0x638] sm:$0xff]
        %v271 = vld [vmem:[#allocation5 + $0x678] sm:$0xff]
        %v272 = vld [vmem:[#allocation5 + $0x680] sm:$0xff]
        %v273 = vld [vmem:[#allocation5 + $0x6c0] sm:$0xff]
        %v274 = vld [vmem:[#allocation5 + $0x6c8] sm:$0xff]
        %v275 = vld [vmem:[#allocation5 + $0x708] sm:$0xff]
        %v276 = vld [vmem:[#allocation5 + $0x710] sm:$0xff]
        %v277 = vld [vmem:[#allocation5 + $0x750] sm:$0xff]
        %v278 = vld [vmem:[#allocation5 + $0x758] sm:$0xff]
        %v279 = vld [vmem:[#allocation5 + $0x798] sm:$0xff]
        %v280 = vld [vmem:[#allocation5 + $0x7a0] sm:$0xff]
        %v281 = vld [vmem:[#allocation5 + $0x7e0] sm:$0xff]
        %v282 = vld [vmem:[#allocation5 + $0x7e8] sm:$0xff]
        %v283 = vld [vmem:[#allocation5 + $0x828] sm:$0xff]
        %v284 = vld [vmem:[#allocation5 + $0x830] sm:$0xff]
        %v285 = vld [vmem:[#allocation5 + $0x870] sm:$0xff]
        %v286 = vld [vmem:[#allocation5 + $0x878] sm:$0xff]
        %v287 = vld [vmem:[#allocation5 + $0x8b8] sm:$0xff]
        %v288 = vld [vmem:[#allocation5 + $0x8c0] sm:$0xff]
        %v289 = vld [vmem:[#allocation5 + $0x10] sm:$0xff]
        %v290 = vld [vmem:[#allocation5 + $0x18] sm:$0xff]
        %v291 = vld [vmem:[#allocation5 + $0x58] sm:$0xff]
        %v292 = vld [vmem:[#allocation5 + $0x60] sm:$0xff]
        %v293 = vld [vmem:[#allocation5 + $0xa0] sm:$0xff]
        %v294 = vld [vmem:[#allocation5 + $0xa8] sm:$0xff]
        %v295 = vld [vmem:[#allocation5 + $0xe8] sm:$0xff]
        %v296 = vld [vmem:[#allocation5 + $0xf0] sm:$0xff]
        %v297 = vld [vmem:[#allocation5 + $0x130] sm:$0xff]
        %v298 = vld [vmem:[#allocation5 + $0x138] sm:$0xff]
        %v299 = vld [vmem:[#allocation5 + $0x178] sm:$0xff]
        %v300 = vld [vmem:[#allocation5 + $0x180] sm:$0xff]
        %v301 = vld [vmem:[#allocation5 + $0x1c0] sm:$0xff]
        %v302 = vld [vmem:[#allocation5 + $0x1c8] sm:$0xff]
        %v303 = vld [vmem:[#allocation5 + $0x208] sm:$0xff]
        %v304 = vld [vmem:[#allocation5 + $0x210] sm:$0xff]
        %v305 = vld [vmem:[#allocation5 + $0x250] sm:$0xff]
        %v306 = vld [vmem:[#allocation5 + $0x258] sm:$0xff]
        %v307 = vld [vmem:[#allocation5 + $0x298] sm:$0xff]
        %v308 = vld [vmem:[#allocation5 + $0x2a0] sm:$0xff]
        %v309 = vld [vmem:[#allocation5 + $0x2e0] sm:$0xff]
        %v310 = vld [vmem:[#allocation5 + $0x2e8] sm:$0xff]
        %v311 = vld [vmem:[#allocation5 + $0x328] sm:$0xff]
        %v312 = vld [vmem:[#allocation5 + $0x330] sm:$0xff]
        %v313 = vld [vmem:[#allocation5 + $0x370] sm:$0xff]
        %v314 = vld [vmem:[#allocation5 + $0x378] sm:$0xff]
        %v315 = vld [vmem:[#allocation5 + $0x3b8] sm:$0xff]
        %v316 = vld [vmem:[#allocation5 + $0x3c0] sm:$0xff]
        %v317 = vld [vmem:[#allocation5 + $0x400] sm:$0xff]
        %v318 = vld [vmem:[#allocation5 + $0x408] sm:$0xff]
        %v319 = vld [vmem:[#allocation5 + $0x448] sm:$0xff]
        %v320 = vld [vmem:[#allocation5 + $0x450] sm:$0xff]
        %v321 = vld [vmem:[#allocation5 + $0x490] sm:$0xff]
        %v322 = vld [vmem:[#allocation5 + $0x498] sm:$0xff]
        %v323 = vld [vmem:[#allocation5 + $0x4d8] sm:$0xff]
        %v324 = vld [vmem:[#allocation5 + $0x4e0] sm:$0xff]
        %v325 = vld [vmem:[#allocation5 + $0x520] sm:$0xff]
        %v326 = vld [vmem:[#allocation5 + $0x528] sm:$0xff]
        %v327 = vld [vmem:[#allocation5 + $0x568] sm:$0xff]
        %v328 = vld [vmem:[#allocation5 + $0x570] sm:$0xff]
        %v329 = vld [vmem:[#allocation5 + $0x5b0] sm:$0xff]
        %v330 = vld [vmem:[#allocation5 + $0x5b8] sm:$0xff]
        %v331 = vld [vmem:[#allocation5 + $0x5f8] sm:$0xff]
        %v332 = vld [vmem:[#allocation5 + $0x600] sm:$0xff]
        %v333 = vld [vmem:[#allocation5 + $0x640] sm:$0xff]
        %v334 = vld [vmem:[#allocation5 + $0x648] sm:$0xff]
        %v335 = vld [vmem:[#allocation5 + $0x688] sm:$0xff]
        %v336 = vld [vmem:[#allocation5 + $0x690] sm:$0xff]
        %v337 = vld [vmem:[#allocation5 + $0x6d0] sm:$0xff]
        %v338 = vld [vmem:[#allocation5 + $0x6d8] sm:$0xff]
        %v339 = vld [vmem:[#allocation5 + $0x718] sm:$0xff]
        %v340 = vld [vmem:[#allocation5 + $0x720] sm:$0xff]
        %v341 = vld [vmem:[#allocation5 + $0x760] sm:$0xff]
        %v342 = vld [vmem:[#allocation5 + $0x768] sm:$0xff]
        %v343 = vld [vmem:[#allocation5 + $0x7a8] sm:$0xff]
        %v344 = vld [vmem:[#allocation5 + $0x7b0] sm:$0xff]
        %v345 = vld [vmem:[#allocation5 + $0x7f0] sm:$0xff]
        %v346 = vld [vmem:[#allocation5 + $0x7f8] sm:$0xff]
        %v347 = vld [vmem:[#allocation5 + $0x838] sm:$0xff]
        %v348 = vld [vmem:[#allocation5 + $0x840] sm:$0xff]
        %v349 = vld [vmem:[#allocation5 + $0x880] sm:$0xff]
        %v350 = vld [vmem:[#allocation5 + $0x888] sm:$0xff]
        %v351 = vld [vmem:[#allocation5 + $0x8c8] sm:$0xff]
        %v352 = vld [vmem:[#allocation5 + $0x8d0] sm:$0xff]
        %v353 = vld [vmem:[#allocation5 + $0x20] sm:$0xff]
        %v354 = vld [vmem:[#allocation5 + $0x28] sm:$0xff]
        %v355 = vld [vmem:[#allocation5 + $0x68] sm:$0xff]
        %v356 = vld [vmem:[#allocation5 + $0x70] sm:$0xff]
        %v357 = vld [vmem:[#allocation5 + $0xb0] sm:$0xff]
        %v358 = vld [vmem:[#allocation5 + $0xb8] sm:$0xff]
        %v359 = vld [vmem:[#allocation5 + $0xf8] sm:$0xff]
        %v360 = vld [vmem:[#allocation5 + $0x100] sm:$0xff]
        %v361 = vld [vmem:[#allocation5 + $0x140] sm:$0xff]
        %v362 = vld [vmem:[#allocation5 + $0x148] sm:$0xff]
        %v363 = vld [vmem:[#allocation5 + $0x188] sm:$0xff]
        %v364 = vld [vmem:[#allocation5 + $0x190] sm:$0xff]
        %v365 = vld [vmem:[#allocation5 + $0x1d0] sm:$0xff]
        %v366 = vld [vmem:[#allocation5 + $0x1d8] sm:$0xff]
        %v367 = vld [vmem:[#allocation5 + $0x218] sm:$0xff]
        %v368 = vld [vmem:[#allocation5 + $0x220] sm:$0xff]
        %v369 = vld [vmem:[#allocation5 + $0x260] sm:$0xff]
        %v370 = vld [vmem:[#allocation5 + $0x268] sm:$0xff]
        %v371 = vld [vmem:[#allocation5 + $0x2a8] sm:$0xff]
        %v372 = vld [vmem:[#allocation5 + $0x2b0] sm:$0xff]
        %v373 = vld [vmem:[#allocation5 + $0x2f0] sm:$0xff]
        %v374 = vld [vmem:[#allocation5 + $0x2f8] sm:$0xff]
        %v375 = vld [vmem:[#allocation5 + $0x338] sm:$0xff]
        %v376 = vld [vmem:[#allocation5 + $0x340] sm:$0xff]
        %v377 = vld [vmem:[#allocation5 + $0x380] sm:$0xff]
        %v378 = vld [vmem:[#allocation5 + $0x388] sm:$0xff]
        %v379 = vld [vmem:[#allocation5 + $0x3c8] sm:$0xff]
        %v380 = vld [vmem:[#allocation5 + $0x3d0] sm:$0xff]
        %v381 = vld [vmem:[#allocation5 + $0x410] sm:$0xff]
        %v382 = vld [vmem:[#allocation5 + $0x418] sm:$0xff]
        %v383 = vld [vmem:[#allocation5 + $0x458] sm:$0xff]
        %v384 = vld [vmem:[#allocation5 + $0x460] sm:$0xff]
        %v385 = vld [vmem:[#allocation5 + $0x4a0] sm:$0xff]
        %v386 = vld [vmem:[#allocation5 + $0x4a8] sm:$0xff]
        %v387 = vld [vmem:[#allocation5 + $0x4e8] sm:$0xff]
        %v388 = vld [vmem:[#allocation5 + $0x4f0] sm:$0xff]
        %v389 = vld [vmem:[#allocation5 + $0x530] sm:$0xff]
        %v390 = vld [vmem:[#allocation5 + $0x538] sm:$0xff]
        %v391 = vld [vmem:[#allocation5 + $0x578] sm:$0xff]
        %v392 = vld [vmem:[#allocation5 + $0x580] sm:$0xff]
        %v393 = vld [vmem:[#allocation5 + $0x5c0] sm:$0xff]
        %v394 = vld [vmem:[#allocation5 + $0x5c8] sm:$0xff]
        %v395 = vld [vmem:[#allocation5 + $0x608] sm:$0xff]
        %v396 = vld [vmem:[#allocation5 + $0x610] sm:$0xff]
        %v397 = vld [vmem:[#allocation5 + $0x650] sm:$0xff]
        %v398 = vld [vmem:[#allocation5 + $0x658] sm:$0xff]
        %v399 = vld [vmem:[#allocation5 + $0x698] sm:$0xff]
        %v400 = vld [vmem:[#allocation5 + $0x6a0] sm:$0xff]
        %v401 = vld [vmem:[#allocation5 + $0x6e0] sm:$0xff]
        %v402 = vld [vmem:[#allocation5 + $0x6e8] sm:$0xff]
        %v403 = vld [vmem:[#allocation5 + $0x728] sm:$0xff]
        %v404 = vld [vmem:[#allocation5 + $0x730] sm:$0xff]
        %v405 = vld [vmem:[#allocation5 + $0x770] sm:$0xff]
        %v406 = vld [vmem:[#allocation5 + $0x778] sm:$0xff]
        %v407 = vld [vmem:[#allocation5 + $0x7b8] sm:$0xff]
        %v408 = vld [vmem:[#allocation5 + $0x7c0] sm:$0xff]
        %v409 = vld [vmem:[#allocation5 + $0x800] sm:$0xff]
        %v410 = vld [vmem:[#allocation5 + $0x808] sm:$0xff]
        %v411 = vld [vmem:[#allocation5 + $0x848] sm:$0xff]
        %v412 = vld [vmem:[#allocation5 + $0x850] sm:$0xff]
        %v413 = vld [vmem:[#allocation5 + $0x890] sm:$0xff]
        %v414 = vld [vmem:[#allocation5 + $0x898] sm:$0xff]
        %v415 = vld [vmem:[#allocation5 + $0x8d8] sm:$0xff]
        %v416 = vld [vmem:[#allocation5 + $0x8e0] sm:$0xff]
        %v417 = vld [vmem:[#allocation5 + $0x30] sm:$0xff]
        %v418 = vld [vmem:[#allocation5 + $0x38] sm:$0xff]
        %v419 = vld [vmem:[#allocation5 + $0x78] sm:$0xff]
        %v420 = vld [vmem:[#allocation5 + $0x80] sm:$0xff]
        %v421 = vld [vmem:[#allocation5 + $0xc0] sm:$0xff]
        %v422 = vld [vmem:[#allocation5 + $0xc8] sm:$0xff]
        %v423 = vld [vmem:[#allocation5 + $0x108] sm:$0xff]
        %v424 = vld [vmem:[#allocation5 + $0x110] sm:$0xff]
        %v425 = vld [vmem:[#allocation5 + $0x150] sm:$0xff]
        %v426 = vld [vmem:[#allocation5 + $0x158] sm:$0xff]
        %v427 = vld [vmem:[#allocation5 + $0x198] sm:$0xff]
        %v428 = vld [vmem:[#allocation5 + $0x1a0] sm:$0xff]
        %v429 = vld [vmem:[#allocation5 + $0x1e0] sm:$0xff]
        %v430 = vld [vmem:[#allocation5 + $0x1e8] sm:$0xff]
        %v431 = vld [vmem:[#allocation5 + $0x228] sm:$0xff]
        %v432 = vld [vmem:[#allocation5 + $0x230] sm:$0xff]
        %v433 = vld [vmem:[#allocation5 + $0x270] sm:$0xff]
        %v434 = vld [vmem:[#allocation5 + $0x278] sm:$0xff]
        %v435 = vld [vmem:[#allocation5 + $0x2b8] sm:$0xff]
        %v436 = vld [vmem:[#allocation5 + $0x2c0] sm:$0xff]
        %v437 = vld [vmem:[#allocation5 + $0x300] sm:$0xff]
        %v438 = vld [vmem:[#allocation5 + $0x308] sm:$0xff]
        %v439 = vld [vmem:[#allocation5 + $0x348] sm:$0xff]
        %v440 = vld [vmem:[#allocation5 + $0x350] sm:$0xff]
        %v441 = vld [vmem:[#allocation5 + $0x390] sm:$0xff]
        %v442 = vld [vmem:[#allocation5 + $0x398] sm:$0xff]
        %v443 = vld [vmem:[#allocation5 + $0x3d8] sm:$0xff]
        %v444 = vld [vmem:[#allocation5 + $0x3e0] sm:$0xff]
        %v445 = vld [vmem:[#allocation5 + $0x420] sm:$0xff]
        %v446 = vld [vmem:[#allocation5 + $0x428] sm:$0xff]
        %v447 = vld [vmem:[#allocation5 + $0x468] sm:$0xff]
        %v448 = vld [vmem:[#allocation5 + $0x470] sm:$0xff]
        %v449 = vld [vmem:[#allocation5 + $0x4b0] sm:$0xff]
        %v450 = vld [vmem:[#allocation5 + $0x4b8] sm:$0xff]
        %v451 = vld [vmem:[#allocation5 + $0x4f8] sm:$0xff]
        %v452 = vld [vmem:[#allocation5 + $0x500] sm:$0xff]
        %v453 = vld [vmem:[#allocation5 + $0x540] sm:$0xff]
        %v454 = vld [vmem:[#allocation5 + $0x548] sm:$0xff]
        %v455 = vld [vmem:[#allocation5 + $0x588] sm:$0xff]
        %v456 = vld [vmem:[#allocation5 + $0x590] sm:$0xff]
        %v457 = vld [vmem:[#allocation5 + $0x5d0] sm:$0xff]
        %v458 = vld [vmem:[#allocation5 + $0x5d8] sm:$0xff]
        %v459 = vld [vmem:[#allocation5 + $0x618] sm:$0xff]
        %v460 = vld [vmem:[#allocation5 + $0x620] sm:$0xff]
        %v461 = vld [vmem:[#allocation5 + $0x660] sm:$0xff]
        %v462 = vld [vmem:[#allocation5 + $0x668] sm:$0xff]
        %v463 = vld [vmem:[#allocation5 + $0x6a8] sm:$0xff]
        %v464 = vld [vmem:[#allocation5 + $0x6b0] sm:$0xff]
        %v465 = vld [vmem:[#allocation5 + $0x6f0] sm:$0xff]
        %v466 = vld [vmem:[#allocation5 + $0x6f8] sm:$0xff]
        %v467 = vld [vmem:[#allocation5 + $0x738] sm:$0xff]
        %v468 = vld [vmem:[#allocation5 + $0x740] sm:$0xff]
        %v469 = vld [vmem:[#allocation5 + $0x780] sm:$0xff]
        %v470 = vld [vmem:[#allocation5 + $0x788] sm:$0xff]
        %v471 = vld [vmem:[#allocation5 + $0x7c8] sm:$0xff]
        %v472 = vld [vmem:[#allocation5 + $0x7d0] sm:$0xff]
        %v473 = vld [vmem:[#allocation5 + $0x810] sm:$0xff]
        %v474 = vld [vmem:[#allocation5 + $0x818] sm:$0xff]
        %v475 = vld [vmem:[#allocation5 + $0x858] sm:$0xff]
        %v476 = vld [vmem:[#allocation5 + $0x860] sm:$0xff]
        %v477 = vld [vmem:[#allocation5 + $0x8a0] sm:$0xff]
        %v478 = vld [vmem:[#allocation5 + $0x8a8] sm:$0xff]
        %v479 = vld [vmem:[#allocation5 + $0x8e8] sm:$0xff]
        %v480 = vld [vmem:[#allocation5 + $0x8f0] sm:$0xff]
        %v481 = vld [vmem:[#allocation5 + $0x40] sm:$0xff]
        %v482 = vld [vmem:[#allocation5 + $0x88] sm:$0xff]
        %v483 = vld [vmem:[#allocation5 + $0xd0] sm:$0xff]
        %v484 = vld [vmem:[#allocation5 + $0x118] sm:$0xff]
        %v485 = vld [vmem:[#allocation5 + $0x160] sm:$0xff]
        %v486 = vld [vmem:[#allocation5 + $0x1a8] sm:$0xff]
        %v487 = vld [vmem:[#allocation5 + $0x1f0] sm:$0xff]
        %v488 = vld [vmem:[#allocation5 + $0x238] sm:$0xff]
        %v489 = vld [vmem:[#allocation5 + $0x280] sm:$0xff]
        %v490 = vld [vmem:[#allocation5 + $0x2c8] sm:$0xff]
        %v491 = vld [vmem:[#allocation5 + $0x310] sm:$0xff]
        %v492 = vld [vmem:[#allocation5 + $0x358] sm:$0xff]
        %v493 = vld [vmem:[#allocation5 + $0x3a0] sm:$0xff]
        %v494 = vld [vmem:[#allocation5 + $0x3e8] sm:$0xff]
        %v495 = vld [vmem:[#allocation5 + $0x430] sm:$0xff]
        %v496 = vld [vmem:[#allocation5 + $0x478] sm:$0xff]
        %v497 = vld [vmem:[#allocation5 + $0x4c0] sm:$0xff]
        %v498 = vld [vmem:[#allocation5 + $0x508] sm:$0xff]
        %v499 = vld [vmem:[#allocation5 + $0x550] sm:$0xff]
        %v500 = vld [vmem:[#allocation5 + $0x598] sm:$0xff]
        %v501 = vld [vmem:[#allocation5 + $0x5e0] sm:$0xff]
        %v502 = vld [vmem:[#allocation5 + $0x628] sm:$0xff]
        %v503 = vld [vmem:[#allocation5 + $0x670] sm:$0xff]
        %v504 = vld [vmem:[#allocation5 + $0x6b8] sm:$0xff]
        %v505 = vld [vmem:[#allocation5 + $0x700] sm:$0xff]
        %v506 = vld [vmem:[#allocation5 + $0x748] sm:$0xff]
        %v507 = vld [vmem:[#allocation5 + $0x790] sm:$0xff]
        %v508 = vld [vmem:[#allocation5 + $0x7d8] sm:$0xff]
        %v509 = vld [vmem:[#allocation5 + $0x820] sm:$0xff]
        %v510 = vld [vmem:[#allocation5 + $0x868] sm:$0xff]
        %v511 = vld [vmem:[#allocation5 + $0x8b0] sm:$0xff]
        %v512 = vld [vmem:[#allocation5 + $0x8f8] sm:$0xff]
        %v513 = vld [vmem:[#allocation7] sm:$0x3]
        %v514 = vld [vmem:[#allocation7 + $0x2] sm:$0x3]
        %v515 = vld [vmem:[#allocation7 + $0x4] sm:$0x3]
        %v516 = vld [vmem:[#allocation7 + $0x6] sm:$0x3]
        %v517 = vld [vmem:[#allocation7 + $0x8] sm:$0x3]
        %v518 = vld [vmem:[#allocation7 + $0xa] sm:$0x3]
        %v519 = vld [vmem:[#allocation7 + $0xc] sm:$0x3]
        %v520 = vld [vmem:[#allocation7 + $0xe] sm:$0x1]
        %v521 = vld [vmem:[#allocation7 + $0xf] sm:$0x1]
        %v522 = vld [vmem:[%s189] sm:$0xff]
        %v523 = vld [vmem:[%s189 + $0x8] sm:$0xff]
        %v524 = vld [vmem:[%s189 + $0x10] sm:$0xff]
        %v525 = vld [vmem:[%s189 + $0x18] sm:$0xff]
        %v527 = vperm.slane %v513, 0
        %v528 = vperm.slane %v513, 1
        %531 = vmatpush.msra.mxu0 %v255
        %532 = vmatpush.msra.mxu0 %v253
        %533 = vmatpush.msra.mxu0 %v251
        %534 = vmatpush.msra.mxu0 %v249
        %535 = vmatpush.msra.mxu0 %v247
        %536 = vmatpush.msra.mxu0 %v245
        %537 = vmatpush.msra.mxu0 %v243
        %538 = vmatpush.msra.mxu0 %v241
        %539 = vmatpush.msra.mxu0 %v239
        %540 = vmatpush.msra.mxu0 %v237
        %541 = vmatpush.msra.mxu0 %v235
        %542 = vmatpush.msra.mxu0 %v233
        %543 = vmatpush.msra.mxu0 %v231
        %544 = vmatpush.msra.mxu0 %v229
        %545 = vmatpush.msra.mxu0 %v227
        %546 = vmatpush.msra.mxu0 %v225
        %547 = vmatmul.f32.gmra.mxu0 %v522
        %v548 = vpop.f32.mrf.mxu0
        %v549 = vadd.f32 %v527, %v548
        %550 = vmatmul.f32.gmra.mxu0 %v524
        %v551 = vpop.f32.mrf.mxu0
        %v552 = vadd.f32 %v527, %v551
        %553 = vdwg.mxu0
        %554 = vmatpush.msra.mxu0 %v287
        %555 = vmatpush.msra.mxu0 %v285
        %556 = vmatpush.msra.mxu0 %v283
        %557 = vmatpush.msra.mxu0 %v281
        %558 = vmatpush.msra.mxu0 %v279
        %559 = vmatpush.msra.mxu0 %v277
        %560 = vmatpush.msra.mxu0 %v275
        %561 = vmatpush.msra.mxu0 %v273
        %562 = vmatpush.msra.mxu0 %v271
        %563 = vmatpush.msra.mxu0 %v269
        %564 = vmatpush.msra.mxu0 %v267
        %565 = vmatpush.msra.mxu0 %v265
        %566 = vmatpush.msra.mxu0 %v263
        %567 = vmatpush.msra.mxu0 %v261
        %568 = vmatpush.msra.mxu0 %v259
        %569 = vmatpush.msra.mxu0 %v257
        %570 = vmatmul.f32.gmra.mxu0 %v523
        %v571 = vpop.f32.mrf.mxu0
        %v572 = vadd.f32 %v549, %v571
        %573 = vmatmul.f32.gmra.mxu0 %v525
        %v574 = vpop.f32.mrf.mxu0
        %v575 = vadd.f32 %v552, %v574
        %576 = vdwg.mxu0
        %577 = vmatpush.msra.mxu0 %v256
        %578 = vmatpush.msra.mxu0 %v254
        %579 = vmatpush.msra.mxu0 %v252
        %580 = vmatpush.msra.mxu0 %v250
        %581 = vmatpush.msra.mxu0 %v248
        %582 = vmatpush.msra.mxu0 %v246
        %583 = vmatpush.msra.mxu0 %v244
        %584 = vmatpush.msra.mxu0 %v242
        %585 = vmatpush.msra.mxu0 %v240
        %586 = vmatpush.msra.mxu0 %v238
        %587 = vmatpush.msra.mxu0 %v236
        %588 = vmatpush.msra.mxu0 %v234
        %589 = vmatpush.msra.mxu0 %v232
        %590 = vmatpush.msra.mxu0 %v230
        %591 = vmatpush.msra.mxu0 %v228
        %592 = vmatpush.msra.mxu0 %v226
        %593 = vmatmul.f32.gmra.mxu0 %v522
        %v594 = vpop.f32.mrf.mxu0
        %v595 = vadd.f32 %v528, %v594
        %596 = vmatmul.f32.gmra.mxu0 %v524
        %v597 = vpop.f32.mrf.mxu0
        %v598 = vadd.f32 %v528, %v597
        %599 = vdwg.mxu0
        %600 = vmatpush.msra.mxu0 %v288
        %601 = vmatpush.msra.mxu0 %v286
        %602 = vmatpush.msra.mxu0 %v284
        %603 = vmatpush.msra.mxu0 %v282
        %604 = vmatpush.msra.mxu0 %v280
        %605 = vmatpush.msra.mxu0 %v278
        %606 = vmatpush.msra.mxu0 %v276
        %607 = vmatpush.msra.mxu0 %v274
        %608 = vmatpush.msra.mxu0 %v272
        %609 = vmatpush.msra.mxu0 %v270
        %610 = vmatpush.msra.mxu0 %v268
        %611 = vmatpush.msra.mxu0 %v266
        %612 = vmatpush.msra.mxu0 %v264
        %613 = vmatpush.msra.mxu0 %v262
        %614 = vmatpush.msra.mxu0 %v260
        %615 = vmatpush.msra.mxu0 %v258
        %616 = vmatmul.f32.gmra.mxu0 %v523
        %v617 = vpop.f32.mrf.mxu0
        %v618 = vadd.f32 %v595, %v617
        %619 = vmatmul.f32.gmra.mxu0 %v525
        %v620 = vpop.f32.mrf.mxu0
        %v621 = vadd.f32 %v598, %v620
        %622 = vdwg.mxu0
        %v623 = vadd.f32 %v572, %v522
        %v624 = vadd.f32 %v618, %v523
        %v625 = vadd.f32 %v575, %v524
        %v626 = vadd.f32 %v621, %v525
        %627 = vmatpush.msra.mxu0 %v447
        %628 = vmatpush.msra.mxu0 %v445
        %629 = vmatpush.msra.mxu0 %v443
        %630 = vmatpush.msra.mxu0 %v441
        %631 = vmatpush.msra.mxu0 %v439
        %632 = vmatpush.msra.mxu0 %v437
        %633 = vmatpush.msra.mxu0 %v435
        %634 = vmatpush.msra.mxu0 %v433
        %635 = vmatpush.msra.mxu0 %v431
        %636 = vmatpush.msra.mxu0 %v429
        %637 = vmatpush.msra.mxu0 %v427
        %638 = vmatpush.msra.mxu0 %v425
        %639 = vmatpush.msra.mxu0 %v423
        %640 = vmatpush.msra.mxu0 %v421
        %641 = vmatpush.msra.mxu0 %v419
        %642 = vmatpush.msra.mxu0 %v417
        %643 = vmatmul.f32.gmra.mxu0 %v623
        %v644 = vpop.f32.mrf.mxu0
        %v645 = vadd.f32 0.0, %v644
        %646 = vmatmul.f32.gmra.mxu0 %v625
        %v647 = vpop.f32.mrf.mxu0
        %v648 = vadd.f32 0.0, %v647
        %649 = vdwg.mxu0
        %650 = vmatpush.msra.mxu0 %v479
        %651 = vmatpush.msra.mxu0 %v477
        %652 = vmatpush.msra.mxu0 %v475
        %653 = vmatpush.msra.mxu0 %v473
        %654 = vmatpush.msra.mxu0 %v471
        %655 = vmatpush.msra.mxu0 %v469
        %656 = vmatpush.msra.mxu0 %v467
        %657 = vmatpush.msra.mxu0 %v465
        %658 = vmatpush.msra.mxu0 %v463
        %659 = vmatpush.msra.mxu0 %v461
        %660 = vmatpush.msra.mxu0 %v459
        %661 = vmatpush.msra.mxu0 %v457
        %662 = vmatpush.msra.mxu0 %v455
        %663 = vmatpush.msra.mxu0 %v453
        %664 = vmatpush.msra.mxu0 %v451
        %665 = vmatpush.msra.mxu0 %v449
        %666 = vmatmul.f32.gmra.mxu0 %v624
        %v667 = vpop.f32.mrf.mxu0
        %v668 = vadd.f32 %v645, %v667
        %669 = vmatmul.f32.gmra.mxu0 %v626
        %v670 = vpop.f32.mrf.mxu0
        %v671 = vadd.f32 %v648, %v670
        %672 = vdwg.mxu0
        %673 = vmatpush.msra.mxu0 %v448
        %674 = vmatpush.msra.mxu0 %v446
        %675 = vmatpush.msra.mxu0 %v444
        %676 = vmatpush.msra.mxu0 %v442
        %677 = vmatpush.msra.mxu0 %v440
        %678 = vmatpush.msra.mxu0 %v438
        %679 = vmatpush.msra.mxu0 %v436
        %680 = vmatpush.msra.mxu0 %v434
        %681 = vmatpush.msra.mxu0 %v432
        %682 = vmatpush.msra.mxu0 %v430
        %683 = vmatpush.msra.mxu0 %v428
        %684 = vmatpush.msra.mxu0 %v426
        %685 = vmatpush.msra.mxu0 %v424
        %686 = vmatpush.msra.mxu0 %v422
        %687 = vmatpush.msra.mxu0 %v420
        %688 = vmatpush.msra.mxu0 %v418
        %689 = vmatmul.f32.gmra.mxu0 %v623
        %v690 = vpop.f32.mrf.mxu0
        %v691 = vadd.f32 0.0, %v690
        %692 = vmatmul.f32.gmra.mxu0 %v625
        %v693 = vpop.f32.mrf.mxu0
        %v694 = vadd.f32 0.0, %v693
        %695 = vdwg.mxu0
        %696 = vmatpush.msra.mxu0 %v480
        %697 = vmatpush.msra.mxu0 %v478
        %698 = vmatpush.msra.mxu0 %v476
        %699 = vmatpush.msra.mxu0 %v474
        %700 = vmatpush.msra.mxu0 %v472
        %701 = vmatpush.msra.mxu0 %v470
        %702 = vmatpush.msra.mxu0 %v468
        %703 = vmatpush.msra.mxu0 %v466
        %704 = vmatpush.msra.mxu0 %v464
        %705 = vmatpush.msra.mxu0 %v462
        %706 = vmatpush.msra.mxu0 %v460
        %707 = vmatpush.msra.mxu0 %v458
        %708 = vmatpush.msra.mxu0 %v456
        %709 = vmatpush.msra.mxu0 %v454
        %710 = vmatpush.msra.mxu0 %v452
        %711 = vmatpush.msra.mxu0 %v450
        %712 = vmatmul.f32.gmra.mxu0 %v624
        %v713 = vpop.f32.mrf.mxu0
        %v714 = vadd.f32 %v691, %v713
        %715 = vmatmul.f32.gmra.mxu0 %v626
        %v716 = vpop.f32.mrf.mxu0
        %v717 = vadd.f32 %v694, %v716
        %718 = vdwg.mxu0
        %v719 = vmul.f32 %v623, %v623
        %v720 = vmul.f32 %v624, %v624
        %v721 = vmul.f32 %v625, %v625
        %v722 = vmul.f32 %v626, %v626
        %723 = vmatpush.msra.mxu0 %v447
        %724 = vmatpush.msra.mxu0 %v445
        %725 = vmatpush.msra.mxu0 %v443
        %726 = vmatpush.msra.mxu0 %v441
        %727 = vmatpush.msra.mxu0 %v439
        %728 = vmatpush.msra.mxu0 %v437
        %729 = vmatpush.msra.mxu0 %v435
        %730 = vmatpush.msra.mxu0 %v433
        %731 = vmatpush.msra.mxu0 %v431
        %732 = vmatpush.msra.mxu0 %v429
        %733 = vmatpush.msra.mxu0 %v427
        %734 = vmatpush.msra.mxu0 %v425
        %735 = vmatpush.msra.mxu0 %v423
        %736 = vmatpush.msra.mxu0 %v421
        %737 = vmatpush.msra.mxu0 %v419
        %738 = vmatpush.msra.mxu0 %v417
        %739 = vmatmul.f32.gmra.mxu0 %v719
        %v740 = vpop.f32.mrf.mxu0
        %v741 = vadd.f32 0.0, %v740
        %742 = vmatmul.f32.gmra.mxu0 %v721
        %v743 = vpop.f32.mrf.mxu0
        %v744 = vadd.f32 0.0, %v743
        %745 = vdwg.mxu0
        %746 = vmatpush.msra.mxu0 %v479
        %747 = vmatpush.msra.mxu0 %v477
        %748 = vmatpush.msra.mxu0 %v475
        %749 = vmatpush.msra.mxu0 %v473
        %750 = vmatpush.msra.mxu0 %v471
        %751 = vmatpush.msra.mxu0 %v469
        %752 = vmatpush.msra.mxu0 %v467
        %753 = vmatpush.msra.mxu0 %v465
        %754 = vmatpush.msra.mxu0 %v463
        %755 = vmatpush.msra.mxu0 %v461
        %756 = vmatpush.msra.mxu0 %v459
        %757 = vmatpush.msra.mxu0 %v457
        %758 = vmatpush.msra.mxu0 %v455
        %759 = vmatpush.msra.mxu0 %v453
        %760 = vmatpush.msra.mxu0 %v451
        %761 = vmatpush.msra.mxu0 %v449
        %762 = vmatmul.f32.gmra.mxu0 %v720
        %v763 = vpop.f32.mrf.mxu0
        %v764 = vadd.f32 %v741, %v763
        %765 = vmatmul.f32.gmra.mxu0 %v722
        %v766 = vpop.f32.mrf.mxu0
        %v767 = vadd.f32 %v744, %v766
        %768 = vdwg.mxu0
        %769 = vmatpush.msra.mxu0 %v448
        %770 = vmatpush.msra.mxu0 %v446
        %771 = vmatpush.msra.mxu0 %v444
        %772 = vmatpush.msra.mxu0 %v442
        %773 = vmatpush.msra.mxu0 %v440
        %774 = vmatpush.msra.mxu0 %v438
        %775 = vmatpush.msra.mxu0 %v436
        %776 = vmatpush.msra.mxu0 %v434
        %777 = vmatpush.msra.mxu0 %v432
        %778 = vmatpush.msra.mxu0 %v430
        %779 = vmatpush.msra.mxu0 %v428
        %780 = vmatpush.msra.mxu0 %v426
        %781 = vmatpush.msra.mxu0 %v424
        %782 = vmatpush.msra.mxu0 %v422
        %783 = vmatpush.msra.mxu0 %v420
        %784 = vmatpush.msra.mxu0 %v418
        %785 = vmatmul.f32.gmra.mxu0 %v719
        %v786 = vpop.f32.mrf.mxu0
        %v787 = vadd.f32 0.0, %v786
        %788 = vmatmul.f32.gmra.mxu0 %v721
        %v789 = vpop.f32.mrf.mxu0
        %v790 = vadd.f32 0.0, %v789
        %791 = vdwg.mxu0
        %792 = vmatpush.msra.mxu0 %v480
        %793 = vmatpush.msra.mxu0 %v478
        %794 = vmatpush.msra.mxu0 %v476
        %795 = vmatpush.msra.mxu0 %v474
        %796 = vmatpush.msra.mxu0 %v472
        %797 = vmatpush.msra.mxu0 %v470
        %798 = vmatpush.msra.mxu0 %v468
        %799 = vmatpush.msra.mxu0 %v466
        %800 = vmatpush.msra.mxu0 %v464
        %801 = vmatpush.msra.mxu0 %v462
        %802 = vmatpush.msra.mxu0 %v460
        %803 = vmatpush.msra.mxu0 %v458
        %804 = vmatpush.msra.mxu0 %v456
        %805 = vmatpush.msra.mxu0 %v454
        %806 = vmatpush.msra.mxu0 %v452
        %807 = vmatpush.msra.mxu0 %v450
        %808 = vmatmul.f32.gmra.mxu0 %v720
        %v809 = vpop.f32.mrf.mxu0
        %v810 = vadd.f32 %v787, %v809
        %811 = vmatmul.f32.gmra.mxu0 %v722
        %v812 = vpop.f32.mrf.mxu0
        %v813 = vadd.f32 %v790, %v812
        %814 = vdwg.mxu0
        %v815 = vmul.f32 %v668, %v668
        %v816 = vmul.f32 %v714, %v714
        %v817 = vmul.f32 %v671, %v671
        %v818 = vmul.f32 %v717, %v717
        %v819 = vsub.f32 %v764, %v815
        %v820 = vsub.f32 %v810, %v816
        %v821 = vsub.f32 %v767, %v817
        %v822 = vsub.f32 %v813, %v818
        %v823 = vsub.f32 %v623, %v668
        %v824 = vsub.f32 %v624, %v714
        %v825 = vsub.f32 %v625, %v671
        %v826 = vsub.f32 %v626, %v717
        %v827 = vadd.f32 %v819, 1e-05
        %v828 = vadd.f32 %v820, 1e-05
        %v829 = vadd.f32 %v821, 1e-05
        %v830 = vadd.f32 %v822, 1e-05
        %v831 = vrsqrt.pop %v827
        %v832 = vmul.f32 %v831, %v827
        %v833 = vmul.f32 %v832, %v831
        %v834 = vmul.f32 0.5, %v833
        %v835 = vsub.f32 1.5, %v834
        %v836 = vmul.f32 %v831, %v835
        %vm837 = vweird.f32 %v827
        %vm838 = vweird.f32 %v831
        %vm839 = vmor %vm837, %vm838
        %v840 = vsel %vm839, %v831, %v836
        %v841 = vrsqrt.pop %v828
        %v842 = vmul.f32 %v841, %v828
        %v843 = vmul.f32 %v842, %v841
        %v844 = vmul.f32 0.5, %v843
        %v845 = vsub.f32 1.5, %v844
        %v846 = vmul.f32 %v841, %v845
        %vm847 = vweird.f32 %v828
        %vm848 = vweird.f32 %v841
        %vm849 = vmor %vm847, %vm848
        %v850 = vsel %vm849, %v841, %v846
        %v851 = vrsqrt.pop %v829
        %v852 = vmul.f32 %v851, %v829
        %v853 = vmul.f32 %v852, %v851
        %v854 = vmul.f32 0.5, %v853
        %v855 = vsub.f32 1.5, %v854
        %v856 = vmul.f32 %v851, %v855
        %vm857 = vweird.f32 %v829
        %vm858 = vweird.f32 %v851
        %vm859 = vmor %vm857, %vm858
        %v860 = vsel %vm859, %v851, %v856
        %v861 = vrsqrt.pop %v830
        %v862 = vmul.f32 %v861, %v830
        %v863 = vmul.f32 %v862, %v861
        %v864 = vmul.f32 0.5, %v863
        %v865 = vsub.f32 1.5, %v864
        %v866 = vmul.f32 %v861, %v865
        %vm867 = vweird.f32 %v830
        %vm868 = vweird.f32 %v861
        %vm869 = vmor %vm867, %vm868
        %v870 = vsel %vm869, %v861, %v866
        %v871 = vmul.f32 %v823, %v840
        %v872 = vmul.f32 %v824, %v850
        %v873 = vmul.f32 %v825, %v860
        %v874 = vmul.f32 %v826, %v870
        %v876 = vperm.slane %v514, 0
        %v877 = vperm.slane %v514, 1
        %v880 = vmul.f32 %v871, %v876
        %v881 = vmul.f32 %v872, %v877
        %v882 = vmul.f32 %v873, %v876
        %v883 = vmul.f32 %v874, %v877
        %v885 = vperm.slane %v515, 0
        %v886 = vperm.slane %v515, 1
        %v889 = vadd.f32 %v880, %v885
        %v890 = vadd.f32 %v881, %v886
        %v891 = vadd.f32 %v882, %v885
        %v892 = vadd.f32 %v883, %v886
        %v893 = vmax.f32 %v889, 0.0
        %v894 = vmax.f32 %v890, 0.0
        %v895 = vmax.f32 %v891, 0.0
        %v896 = vmax.f32 %v892, 0.0
        %v898 = vperm.slane %v516, 0
        %v899 = vperm.slane %v516, 1
        %902 = vmatpush.msra.mxu0 %v319
        %903 = vmatpush.msra.mxu0 %v317
        %904 = vmatpush.msra.mxu0 %v315
        %905 = vmatpush.msra.mxu0 %v313
        %906 = vmatpush.msra.mxu0 %v311
        %907 = vmatpush.msra.mxu0 %v309
        %908 = vmatpush.msra.mxu0 %v307
        %909 = vmatpush.msra.mxu0 %v305
        %910 = vmatpush.msra.mxu0 %v303
        %911 = vmatpush.msra.mxu0 %v301
        %912 = vmatpush.msra.mxu0 %v299
        %913 = vmatpush.msra.mxu0 %v297
        %914 = vmatpush.msra.mxu0 %v295
        %915 = vmatpush.msra.mxu0 %v293
        %916 = vmatpush.msra.mxu0 %v291
        %917 = vmatpush.msra.mxu0 %v289
        %918 = vmatmul.f32.gmra.mxu0 %v893
        %v919 = vpop.f32.mrf.mxu0
        %v920 = vadd.f32 %v898, %v919
        %921 = vmatmul.f32.gmra.mxu0 %v895
        %v922 = vpop.f32.mrf.mxu0
        %v923 = vadd.f32 %v898, %v922
        %924 = vdwg.mxu0
        %925 = vmatpush.msra.mxu0 %v351
        %926 = vmatpush.msra.mxu0 %v349
        %927 = vmatpush.msra.mxu0 %v347
        %928 = vmatpush.msra.mxu0 %v345
        %929 = vmatpush.msra.mxu0 %v343
        %930 = vmatpush.msra.mxu0 %v341
        %931 = vmatpush.msra.mxu0 %v339
        %932 = vmatpush.msra.mxu0 %v337
        %933 = vmatpush.msra.mxu0 %v335
        %934 = vmatpush.msra.mxu0 %v333
        %935 = vmatpush.msra.mxu0 %v331
        %936 = vmatpush.msra.mxu0 %v329
        %937 = vmatpush.msra.mxu0 %v327
        %938 = vmatpush.msra.mxu0 %v325
        %939 = vmatpush.msra.mxu0 %v323
        %940 = vmatpush.msra.mxu0 %v321
        %941 = vmatmul.f32.gmra.mxu0 %v894
        %v942 = vpop.f32.mrf.mxu0
        %v943 = vadd.f32 %v920, %v942
        %944 = vmatmul.f32.gmra.mxu0 %v896
        %v945 = vpop.f32.mrf.mxu0
        %v946 = vadd.f32 %v923, %v945
        %947 = vdwg.mxu0
        %948 = vmatpush.msra.mxu0 %v320
        %949 = vmatpush.msra.mxu0 %v318
        %950 = vmatpush.msra.mxu0 %v316
        %951 = vmatpush.msra.mxu0 %v314
        %952 = vmatpush.msra.mxu0 %v312
        %953 = vmatpush.msra.mxu0 %v310
        %954 = vmatpush.msra.mxu0 %v308
        %955 = vmatpush.msra.mxu0 %v306
        %956 = vmatpush.msra.mxu0 %v304
        %957 = vmatpush.msra.mxu0 %v302
        %958 = vmatpush.msra.mxu0 %v300
        %959 = vmatpush.msra.mxu0 %v298
        %960 = vmatpush.msra.mxu0 %v296
        %961 = vmatpush.msra.mxu0 %v294
        %962 = vmatpush.msra.mxu0 %v292
        %963 = vmatpush.msra.mxu0 %v290
        %964 = vmatmul.f32.gmra.mxu0 %v893
        %v965 = vpop.f32.mrf.mxu0
        %v966 = vadd.f32 %v899, %v965
        %967 = vmatmul.f32.gmra.mxu0 %v895
        %v968 = vpop.f32.mrf.mxu0
        %v969 = vadd.f32 %v899, %v968
        %970 = vdwg.mxu0
        %971 = vmatpush.msra.mxu0 %v352
        %972 = vmatpush.msra.mxu0 %v350
        %973 = vmatpush.msra.mxu0 %v348
        %974 = vmatpush.msra.mxu0 %v346
        %975 = vmatpush.msra.mxu0 %v344
        %976 = vmatpush.msra.mxu0 %v342
        %977 = vmatpush.msra.mxu0 %v340
        %978 = vmatpush.msra.mxu0 %v338
        %979 = vmatpush.msra.mxu0 %v336
        %980 = vmatpush.msra.mxu0 %v334
        %981 = vmatpush.msra.mxu0 %v332
        %982 = vmatpush.msra.mxu0 %v330
        %983 = vmatpush.msra.mxu0 %v328
        %984 = vmatpush.msra.mxu0 %v326
        %985 = vmatpush.msra.mxu0 %v324
        %986 = vmatpush.msra.mxu0 %v322
        %987 = vmatmul.f32.gmra.mxu0 %v894
        %v988 = vpop.f32.mrf.mxu0
        %v989 = vadd.f32 %v966, %v988
        %990 = vmatmul.f32.gmra.mxu0 %v896
        %v991 = vpop.f32.mrf.mxu0
        %v992 = vadd.f32 %v969, %v991
        %993 = vdwg.mxu0
        %v994 = vadd.f32 %v943, %v623
        %v995 = vadd.f32 %v989, %v624
        %v996 = vadd.f32 %v946, %v625
        %v997 = vadd.f32 %v992, %v626
        %v998 = vtanh.pop %v994
        %v999 = vtanh.pop %v995
        %v1000 = vtanh.pop %v996
        %v1001 = vtanh.pop %v997
        %v1003 = vperm.slane %v517, 0
        %v1004 = vperm.slane %v517, 1
        %1007 = vmatpush.msra.mxu0 %v383
        %1008 = vmatpush.msra.mxu0 %v381
        %1009 = vmatpush.msra.mxu0 %v379
        %1010 = vmatpush.msra.mxu0 %v377
        %1011 = vmatpush.msra.mxu0 %v375
        %1012 = vmatpush.msra.mxu0 %v373
        %1013 = vmatpush.msra.mxu0 %v371
        %1014 = vmatpush.msra.mxu0 %v369
        %1015 = vmatpush.msra.mxu0 %v367
        %1016 = vmatpush.msra.mxu0 %v365
        %1017 = vmatpush.msra.mxu0 %v363
        %1018 = vmatpush.msra.mxu0 %v361
        %1019 = vmatpush.msra.mxu0 %v359
        %1020 = vmatpush.msra.mxu0 %v357
        %1021 = vmatpush.msra.mxu0 %v355
        %1022 = vmatpush.msra.mxu0 %v353
        %1023 = vmatmul.f32.gmra.mxu0 %v998
        %v1024 = vpop.f32.mrf.mxu0
        %v1025 = vadd.f32 %v1003, %v1024
        %1026 = vmatmul.f32.gmra.mxu0 %v1000
        %v1027 = vpop.f32.mrf.mxu0
        %v1028 = vadd.f32 %v1003, %v1027
        %1029 = vdwg.mxu0
        %1030 = vmatpush.msra.mxu0 %v415
        %1031 = vmatpush.msra.mxu0 %v413
        %1032 = vmatpush.msra.mxu0 %v411
        %1033 = vmatpush.msra.mxu0 %v409
        %1034 = vmatpush.msra.mxu0 %v407
        %1035 = vmatpush.msra.mxu0 %v405
        %1036 = vmatpush.msra.mxu0 %v403
        %1037 = vmatpush.msra.mxu0 %v401
        %1038 = vmatpush.msra.mxu0 %v399
        %1039 = vmatpush.msra.mxu0 %v397
        %1040 = vmatpush.msra.mxu0 %v395
        %1041 = vmatpush.msra.mxu0 %v393
        %1042 = vmatpush.msra.mxu0 %v391
        %1043 = vmatpush.msra.mxu0 %v389
        %1044 = vmatpush.msra.mxu0 %v387
        %1045 = vmatpush.msra.mxu0 %v385
        %1046 = vmatmul.f32.gmra.mxu0 %v999
        %v1047 = vpop.f32.mrf.mxu0
        %v1048 = vadd.f32 %v1025, %v1047
        %1049 = vmatmul.f32.gmra.mxu0 %v1001
        %v1050 = vpop.f32.mrf.mxu0
        %v1051 = vadd.f32 %v1028, %v1050
        %1052 = vdwg.mxu0
        %1053 = vmatpush.msra.mxu0 %v384
        %1054 = vmatpush.msra.mxu0 %v382
        %1055 = vmatpush.msra.mxu0 %v380
        %1056 = vmatpush.msra.mxu0 %v378
        %1057 = vmatpush.msra.mxu0 %v376
        %1058 = vmatpush.msra.mxu0 %v374
        %1059 = vmatpush.msra.mxu0 %v372
        %1060 = vmatpush.msra.mxu0 %v370
        %1061 = vmatpush.msra.mxu0 %v368
        %1062 = vmatpush.msra.mxu0 %v366
        %1063 = vmatpush.msra.mxu0 %v364
        %1064 = vmatpush.msra.mxu0 %v362
        %1065 = vmatpush.msra.mxu0 %v360
        %1066 = vmatpush.msra.mxu0 %v358
        %1067 = vmatpush.msra.mxu0 %v356
        %1068 = vmatpush.msra.mxu0 %v354
        %1069 = vmatmul.f32.gmra.mxu0 %v998
        %v1070 = vpop.f32.mrf.mxu0
        %v1071 = vadd.f32 %v1004, %v1070
        %1072 = vmatmul.f32.gmra.mxu0 %v1000
        %v1073 = vpop.f32.mrf.mxu0
        %v1074 = vadd.f32 %v1004, %v1073
        %1075 = vdwg.mxu0
        %1076 = vmatpush.msra.mxu0 %v416
        %1077 = vmatpush.msra.mxu0 %v414
        %1078 = vmatpush.msra.mxu0 %v412
        %1079 = vmatpush.msra.mxu0 %v410
        %1080 = vmatpush.msra.mxu0 %v408
        %1081 = vmatpush.msra.mxu0 %v406
        %1082 = vmatpush.msra.mxu0 %v404
        %1083 = vmatpush.msra.mxu0 %v402
        %1084 = vmatpush.msra.mxu0 %v400
        %1085 = vmatpush.msra.mxu0 %v398
        %1086 = vmatpush.msra.mxu0 %v396
        %1087 = vmatpush.msra.mxu0 %v394
        %1088 = vmatpush.msra.mxu0 %v392
        %1089 = vmatpush.msra.mxu0 %v390
        %1090 = vmatpush.msra.mxu0 %v388
        %1091 = vmatpush.msra.mxu0 %v386
        %1092 = vmatmul.f32.gmra.mxu0 %v999
        %v1093 = vpop.f32.mrf.mxu0
        %v1094 = vadd.f32 %v1071, %v1093
        %1095 = vmatmul.f32.gmra.mxu0 %v1001
        %v1096 = vpop.f32.mrf.mxu0
        %v1097 = vadd.f32 %v1074, %v1096
        %1098 = vdwg.mxu0
        %v1099 = vadd.f32 %v998, %v1048
        %v1100 = vadd.f32 %v999, %v1094
        %v1101 = vadd.f32 %v1000, %v1051
        %v1102 = vadd.f32 %v1001, %v1097
        %1103 = vmatpush.msra.mxu0 %v447
        %1104 = vmatpush.msra.mxu0 %v445
        %1105 = vmatpush.msra.mxu0 %v443
        %1106 = vmatpush.msra.mxu0 %v441
        %1107 = vmatpush.msra.mxu0 %v439
        %1108 = vmatpush.msra.mxu0 %v437
        %1109 = vmatpush.msra.mxu0 %v435
        %1110 = vmatpush.msra.mxu0 %v433
        %1111 = vmatpush.msra.mxu0 %v431
        %1112 = vmatpush.msra.mxu0 %v429
        %1113 = vmatpush.msra.mxu0 %v427
        %1114 = vmatpush.msra.mxu0 %v425
        %1115 = vmatpush.msra.mxu0 %v423
        %1116 = vmatpush.msra.mxu0 %v421
        %1117 = vmatpush.msra.mxu0 %v419
        %1118 = vmatpush.msra.mxu0 %v417
        %1119 = vmatmul.f32.gmra.mxu0 %v1099
        %v1120 = vpop.f32.mrf.mxu0
        %v1121 = vadd.f32 0.0, %v1120
        %1122 = vmatmul.f32.gmra.mxu0 %v1101
        %v1123 = vpop.f32.mrf.mxu0
        %v1124 = vadd.f32 0.0, %v1123
        %1125 = vdwg.mxu0
        %1126 = vmatpush.msra.mxu0 %v479
        %1127 = vmatpush.msra.mxu0 %v477
        %1128 = vmatpush.msra.mxu0 %v475
        %1129 = vmatpush.msra.mxu0 %v473
        %1130 = vmatpush.msra.mxu0 %v471
        %1131 = vmatpush.msra.mxu0 %v469
        %1132 = vmatpush.msra.mxu0 %v467
        %1133 = vmatpush.msra.mxu0 %v465
        %1134 = vmatpush.msra.mxu0 %v463
        %1135 = vmatpush.msra.mxu0 %v461
        %1136 = vmatpush.msra.mxu0 %v459
        %1137 = vmatpush.msra.mxu0 %v457
        %1138 = vmatpush.msra.mxu0 %v455
        %1139 = vmatpush.msra.mxu0 %v453
        %1140 = vmatpush.msra.mxu0 %v451
        %1141 = vmatpush.msra.mxu0 %v449
        %1142 = vmatmul.f32.gmra.mxu0 %v1100
        %v1143 = vpop.f32.mrf.mxu0
        %v1144 = vadd.f32 %v1121, %v1143
        %1145 = vmatmul.f32.gmra.mxu0 %v1102
        %v1146 = vpop.f32.mrf.mxu0
        %v1147 = vadd.f32 %v1124, %v1146
        %1148 = vdwg.mxu0
        %1149 = vmatpush.msra.mxu0 %v448
        %1150 = vmatpush.msra.mxu0 %v446
        %1151 = vmatpush.msra.mxu0 %v444
        %1152 = vmatpush.msra.mxu0 %v442
        %1153 = vmatpush.msra.mxu0 %v440
        %1154 = vmatpush.msra.mxu0 %v438
        %1155 = vmatpush.msra.mxu0 %v436
        %1156 = vmatpush.msra.mxu0 %v434
        %1157 = vmatpush.msra.mxu0 %v432
        %1158 = vmatpush.msra.mxu0 %v430
        %1159 = vmatpush.msra.mxu0 %v428
        %1160 = vmatpush.msra.mxu0 %v426
        %1161 = vmatpush.msra.mxu0 %v424
        %1162 = vmatpush.msra.mxu0 %v422
        %1163 = vmatpush.msra.mxu0 %v420
        %1164 = vmatpush.msra.mxu0 %v418
        %1165 = vmatmul.f32.gmra.mxu0 %v1099
        %v1166 = vpop.f32.mrf.mxu0
        %v1167 = vadd.f32 0.0, %v1166
        %1168 = vmatmul.f32.gmra.mxu0 %v1101
        %v1169 = vpop.f32.mrf.mxu0
        %v1170 = vadd.f32 0.0, %v1169
        %1171 = vdwg.mxu0
        %1172 = vmatpush.msra.mxu0 %v480
        %1173 = vmatpush.msra.mxu0 %v478
        %1174 = vmatpush.msra.mxu0 %v476
        %1175 = vmatpush.msra.mxu0 %v474
        %1176 = vmatpush.msra.mxu0 %v472
        %1177 = vmatpush.msra.mxu0 %v470
        %1178 = vmatpush.msra.mxu0 %v468
        %1179 = vmatpush.msra.mxu0 %v466
        %1180 = vmatpush.msra.mxu0 %v464
        %1181 = vmatpush.msra.mxu0 %v462
        %1182 = vmatpush.msra.mxu0 %v460
        %1183 = vmatpush.msra.mxu0 %v458
        %1184 = vmatpush.msra.mxu0 %v456
        %1185 = vmatpush.msra.mxu0 %v454
        %1186 = vmatpush.msra.mxu0 %v452
        %1187 = vmatpush.msra.mxu0 %v450
        %1188 = vmatmul.f32.gmra.mxu0 %v1100
        %v1189 = vpop.f32.mrf.mxu0
        %v1190 = vadd.f32 %v1167, %v1189
        %1191 = vmatmul.f32.gmra.mxu0 %v1102
        %v1192 = vpop.f32.mrf.mxu0
        %v1193 = vadd.f32 %v1170, %v1192
        %1194 = vdwg.mxu0
        %v1195 = vmul.f32 %v1099, %v1099
        %v1196 = vmul.f32 %v1100, %v1100
        %v1197 = vmul.f32 %v1101, %v1101
        %v1198 = vmul.f32 %v1102, %v1102
        %1199 = vmatpush.msra.mxu0 %v447
        %1200 = vmatpush.msra.mxu0 %v445
        %1201 = vmatpush.msra.mxu0 %v443
        %1202 = vmatpush.msra.mxu0 %v441
        %1203 = vmatpush.msra.mxu0 %v439
        %1204 = vmatpush.msra.mxu0 %v437
        %1205 = vmatpush.msra.mxu0 %v435
        %1206 = vmatpush.msra.mxu0 %v433
        %1207 = vmatpush.msra.mxu0 %v431
        %1208 = vmatpush.msra.mxu0 %v429
        %1209 = vmatpush.msra.mxu0 %v427
        %1210 = vmatpush.msra.mxu0 %v425
        %1211 = vmatpush.msra.mxu0 %v423
        %1212 = vmatpush.msra.mxu0 %v421
        %1213 = vmatpush.msra.mxu0 %v419
        %1214 = vmatpush.msra.mxu0 %v417
        %1215 = vmatmul.f32.gmra.mxu0 %v1195
        %v1216 = vpop.f32.mrf.mxu0
        %v1217 = vadd.f32 0.0, %v1216
        %1218 = vmatmul.f32.gmra.mxu0 %v1197
        %v1219 = vpop.f32.mrf.mxu0
        %v1220 = vadd.f32 0.0, %v1219
        %1221 = vdwg.mxu0
        %1222 = vmatpush.msra.mxu0 %v479
        %1223 = vmatpush.msra.mxu0 %v477
        %1224 = vmatpush.msra.mxu0 %v475
        %1225 = vmatpush.msra.mxu0 %v473
        %1226 = vmatpush.msra.mxu0 %v471
        %1227 = vmatpush.msra.mxu0 %v469
        %1228 = vmatpush.msra.mxu0 %v467
        %1229 = vmatpush.msra.mxu0 %v465
        %1230 = vmatpush.msra.mxu0 %v463
        %1231 = vmatpush.msra.mxu0 %v461
        %1232 = vmatpush.msra.mxu0 %v459
        %1233 = vmatpush.msra.mxu0 %v457
        %1234 = vmatpush.msra.mxu0 %v455
        %1235 = vmatpush.msra.mxu0 %v453
        %1236 = vmatpush.msra.mxu0 %v451
        %1237 = vmatpush.msra.mxu0 %v449
        %1238 = vmatmul.f32.gmra.mxu0 %v1196
        %v1239 = vpop.f32.mrf.mxu0
        %v1240 = vadd.f32 %v1217, %v1239
        %1241 = vmatmul.f32.gmra.mxu0 %v1198
        %v1242 = vpop.f32.mrf.mxu0
        %v1243 = vadd.f32 %v1220, %v1242
        %1244 = vdwg.mxu0
        %1245 = vmatpush.msra.mxu0 %v448
        %1246 = vmatpush.msra.mxu0 %v446
        %1247 = vmatpush.msra.mxu0 %v444
        %1248 = vmatpush.msra.mxu0 %v442
        %1249 = vmatpush.msra.mxu0 %v440
        %1250 = vmatpush.msra.mxu0 %v438
        %1251 = vmatpush.msra.mxu0 %v436
        %1252 = vmatpush.msra.mxu0 %v434
        %1253 = vmatpush.msra.mxu0 %v432
        %1254 = vmatpush.msra.mxu0 %v430
        %1255 = vmatpush.msra.mxu0 %v428
        %1256 = vmatpush.msra.mxu0 %v426
        %1257 = vmatpush.msra.mxu0 %v424
        %1258 = vmatpush.msra.mxu0 %v422
        %1259 = vmatpush.msra.mxu0 %v420
        %1260 = vmatpush.msra.mxu0 %v418
        %1261 = vmatmul.f32.gmra.mxu0 %v1195
        %v1262 = vpop.f32.mrf.mxu0
        %v1263 = vadd.f32 0.0, %v1262
        %1264 = vmatmul.f32.gmra.mxu0 %v1197
        %v1265 = vpop.f32.mrf.mxu0
        %v1266 = vadd.f32 0.0, %v1265
        %1267 = vdwg.mxu0
        %1268 = vmatpush.msra.mxu0 %v480
        %1269 = vmatpush.msra.mxu0 %v478
        %1270 = vmatpush.msra.mxu0 %v476
        %1271 = vmatpush.msra.mxu0 %v474
        %1272 = vmatpush.msra.mxu0 %v472
        %1273 = vmatpush.msra.mxu0 %v470
        %1274 = vmatpush.msra.mxu0 %v468
        %1275 = vmatpush.msra.mxu0 %v466
        %1276 = vmatpush.msra.mxu0 %v464
        %1277 = vmatpush.msra.mxu0 %v462
        %1278 = vmatpush.msra.mxu0 %v460
        %1279 = vmatpush.msra.mxu0 %v458
        %1280 = vmatpush.msra.mxu0 %v456
        %1281 = vmatpush.msra.mxu0 %v454
        %1282 = vmatpush.msra.mxu0 %v452
        %1283 = vmatpush.msra.mxu0 %v450
        %1284 = vmatmul.f32.gmra.mxu0 %v1196
        %v1285 = vpop.f32.mrf.mxu0
        %v1286 = vadd.f32 %v1263, %v1285
        %1287 = vmatmul.f32.gmra.mxu0 %v1198
        %v1288 = vpop.f32.mrf.mxu0
        %v1289 = vadd.f32 %v1266, %v1288
        %1290 = vdwg.mxu0
        %v1291 = vmul.f32 %v1144, %v1144
        %v1292 = vmul.f32 %v1190, %v1190
        %v1293 = vmul.f32 %v1147, %v1147
        %v1294 = vmul.f32 %v1193, %v1193
        %v1295 = vsub.f32 %v1240, %v1291
        %v1296 = vsub.f32 %v1286, %v1292
        %v1297 = vsub.f32 %v1243, %v1293
        %v1298 = vsub.f32 %v1289, %v1294
        %v1299 = vsub.f32 %v1099, %v1144
        %v1300 = vsub.f32 %v1100, %v1190
        %v1301 = vsub.f32 %v1101, %v1147
        %v1302 = vsub.f32 %v1102, %v1193
        %v1303 = vadd.f32 %v1295, 1e-05
        %v1304 = vadd.f32 %v1296, 1e-05
        %v1305 = vadd.f32 %v1297, 1e-05
        %v1306 = vadd.f32 %v1298, 1e-05
        %v1307 = vrsqrt.pop %v1303
        %v1308 = vmul.f32 %v1307, %v1303
        %v1309 = vmul.f32 %v1308, %v1307
        %v1310 = vmul.f32 0.5, %v1309
        %v1311 = vsub.f32 1.5, %v1310
        %v1312 = vmul.f32 %v1307, %v1311
        %vm1313 = vweird.f32 %v1303
        %vm1314 = vweird.f32 %v1307
        %vm1315 = vmor %vm1313, %vm1314
        %v1316 = vsel %vm1315, %v1307, %v1312
        %v1317 = vrsqrt.pop %v1304
        %v1318 = vmul.f32 %v1317, %v1304
        %v1319 = vmul.f32 %v1318, %v1317
        %v1320 = vmul.f32 0.5, %v1319
        %v1321 = vsub.f32 1.5, %v1320
        %v1322 = vmul.f32 %v1317, %v1321
        %vm1323 = vweird.f32 %v1304
        %vm1324 = vweird.f32 %v1317
        %vm1325 = vmor %vm1323, %vm1324
        %v1326 = vsel %vm1325, %v1317, %v1322
        %v1327 = vrsqrt.pop %v1305
        %v1328 = vmul.f32 %v1327, %v1305
        %v1329 = vmul.f32 %v1328, %v1327
        %v1330 = vmul.f32 0.5, %v1329
        %v1331 = vsub.f32 1.5, %v1330
        %v1332 = vmul.f32 %v1327, %v1331
        %vm1333 = vweird.f32 %v1305
        %vm1334 = vweird.f32 %v1327
        %vm1335 = vmor %vm1333, %vm1334
        %v1336 = vsel %vm1335, %v1327, %v1332
        %v1337 = vrsqrt.pop %v1306
        %v1338 = vmul.f32 %v1337, %v1306
        %v1339 = vmul.f32 %v1338, %v1337
        %v1340 = vmul.f32 0.5, %v1339
        %v1341 = vsub.f32 1.5, %v1340
        %v1342 = vmul.f32 %v1337, %v1341
        %vm1343 = vweird.f32 %v1306
        %vm1344 = vweird.f32 %v1337
        %vm1345 = vmor %vm1343, %vm1344
        %v1346 = vsel %vm1345, %v1337, %v1342
        %v1347 = vmul.f32 %v1299, %v1316
        %v1348 = vmul.f32 %v1300, %v1326
        %v1349 = vmul.f32 %v1301, %v1336
        %v1350 = vmul.f32 %v1302, %v1346
        %v1352 = vperm.slane %v518, 0
        %v1353 = vperm.slane %v518, 1
        %v1356 = vmul.f32 %v1347, %v1352
        %v1357 = vmul.f32 %v1348, %v1353
        %v1358 = vmul.f32 %v1349, %v1352
        %v1359 = vmul.f32 %v1350, %v1353
        %v1361 = vperm.slane %v519, 0
        %v1362 = vperm.slane %v519, 1
        %v1365 = vadd.f32 %v1356, %v1361
        %v1366 = vadd.f32 %v1357, %v1362
        %v1367 = vadd.f32 %v1358, %v1361
        %v1368 = vadd.f32 %v1359, %v1362
        %v1370 = vperm.slane %v520, 0
        %1372 = vmatpush.msra.mxu0 %v496
        %1373 = vmatpush.msra.mxu0 %v495
        %1374 = vmatpush.msra.mxu0 %v494
        %1375 = vmatpush.msra.mxu0 %v493
        %1376 = vmatpush.msra.mxu0 %v492
        %1377 = vmatpush.msra.mxu0 %v491
        %1378 = vmatpush.msra.mxu0 %v490
        %1379 = vmatpush.msra.mxu0 %v489
        %1380 = vmatpush.msra.mxu0 %v488
        %1381 = vmatpush.msra.mxu0 %v487
        %1382 = vmatpush.msra.mxu0 %v486
        %1383 = vmatpush.msra.mxu0 %v485
        %1384 = vmatpush.msra.mxu0 %v484
        %1385 = vmatpush.msra.mxu0 %v483
        %1386 = vmatpush.msra.mxu0 %v482
        %1387 = vmatpush.msra.mxu0 %v481
        %1388 = vmatmul.f32.gmra.mxu0 %v1365
        %v1389 = vpop.f32.mrf.mxu0
        %v1390 = vadd.f32 %v1370, %v1389
        %1391 = vmatmul.f32.gmra.mxu0 %v1367
        %v1392 = vpop.f32.mrf.mxu0
        %v1393 = vadd.f32 %v1370, %v1392
        %1394 = vdwg.mxu0
        %1395 = vmatpush.msra.mxu0 %v512
        %1396 = vmatpush.msra.mxu0 %v511
        %1397 = vmatpush.msra.mxu0 %v510
        %1398 = vmatpush.msra.mxu0 %v509
        %1399 = vmatpush.msra.mxu0 %v508
        %1400 = vmatpush.msra.mxu0 %v507
        %1401 = vmatpush.msra.mxu0 %v506
        %1402 = vmatpush.msra.mxu0 %v505
        %1403 = vmatpush.msra.mxu0 %v504
        %1404 = vmatpush.msra.mxu0 %v503
        %1405 = vmatpush.msra.mxu0 %v502
        %1406 = vmatpush.msra.mxu0 %v501
        %1407 = vmatpush.msra.mxu0 %v500
        %1408 = vmatpush.msra.mxu0 %v499
        %1409 = vmatpush.msra.mxu0 %v498
        %1410 = vmatpush.msra.mxu0 %v497
        %1411 = vmatmul.f32.gmra.mxu0 %v1366
        %v1412 = vpop.f32.mrf.mxu0
        %v1413 = vadd.f32 %v1390, %v1412
        %1414 = vmatmul.f32.gmra.mxu0 %v1368
        %v1415 = vpop.f32.mrf.mxu0
        %v1416 = vadd.f32 %v1393, %v1415
        %1417 = vdwg.mxu0
        %v1418 = vxor.u32 %v1413, 2147483648
        %v1419 = vxor.u32 %v1416, 2147483648
        %v1420 = vmul.f32 %v1418, 1.442695
        %v1421 = vpow.pop %v1420
        %v1422 = vmul.f32 %v1419, 1.442695
        %v1423 = vpow.pop %v1422
        %v1424 = vadd.f32 %v1421, 1.0
        %v1425 = vadd.f32 %v1423, 1.0
        %v1426 = vrcp.pop %v1424
        %v1427 = vmul.f32 %v1424, %v1426
        %v1428 = vsub.f32 1.0, %v1427
        %v1429 = vmul.f32 %v1426, %v1428
        %v1430 = vadd.f32 %v1426, %v1429
        %vm1431 = vweird.f32 %v1424
        %vm1432 = vweird.f32 %v1426
        %vm1433 = vmor %vm1431, %vm1432
        %v1434 = vsel %vm1433, %v1426, %v1430
        %v1435 = vand.u32 2147483647, %v1424
        %vm1436 = vcmp.eq.f32.partialorder %v1435, 8.507059e+37
        %v1437 = vand.u32 %v1424, 2147483648
        %v1438 = vor.u32 1.1754944e-38, %v1437
        %v1439 = vsel %vm1436, %v1438, %v1434
        %v1440 = vmul.f32 1.0, %v1439
        %v1441 = vrcp.pop %v1425
        %v1442 = vmul.f32 %v1425, %v1441
        %v1443 = vsub.f32 1.0, %v1442
        %v1444 = vmul.f32 %v1441, %v1443
        %v1445 = vadd.f32 %v1441, %v1444
        %vm1446 = vweird.f32 %v1425
        %vm1447 = vweird.f32 %v1441
        %vm1448 = vmor %vm1446, %vm1447
        %v1449 = vsel %vm1448, %v1441, %v1445
        %v1450 = vand.u32 2147483647, %v1425
        %vm1451 = vcmp.eq.f32.partialorder %v1450, 8.507059e+37
        %v1452 = vand.u32 %v1425, 2147483648
        %v1453 = vor.u32 1.1754944e-38, %v1452
        %v1454 = vsel %vm1451, %v1453, %v1449
        %v1455 = vmul.f32 1.0, %v1454
        %v1456 = vsub.f32 %v1440, %v1413
        %v1457 = vsub.f32 %v1455, %v1416
        %v1459 = vperm.slane %v521, 0
        %v1461 = vmul.f32 %v1459, %v1456
        %v1462 = vmul.f32 %v1459, %v1457
        %v1463 = vadd.f32 %v1413, %v1461
        %v1464 = vadd.f32 %v1416, %v1462
        %1465 = vst [vmem:[%s222] sm:$0xff] %v1463
        %1466 = vst [vmem:[%s222 + $0x8] sm:$0xff] %v1464
        %s1467 = sand.u32 %s97, 1
        %s1468 = scalar_lea.sflag [#allocation4], %s1467
        %s1469 = sand.u32 %s97, 1
        %s1470 = smul.addr %s1469, 16
        %s1471 = scalar_lea.vmem [#allocation8], %s1470
        // Predicated region
        $region45: #{tpu_custom_call.1} parent=31 // pred_check
          %p1472 = pneg %p107
        $region46: #{tpu_custom_call.1} parent=31 // pred_check_branch
          %1474 = sbr.rel (%p1472) target = $region48
        $region47: #{tpu_custom_call.1} parent=31 // pred_region
          %s1475 = smul.u32 2, %s21
          %1477 = vsyncadd %s1468, 0
          %s1478 = smul.addr %s1475, 8
          %s1479 = scalar_lea.hbm %s3, %s1478
          %s1480 = sshll.u32 %s1471, 4
          %s1481 = int_to_ptr.vmem [resolvable:$true] %s1480
          %s1482 = sshll.u32 %s1479, 4
          %s1483 = int_to_ptr.hbm [resolvable:$true] %s1482
          %1488 = dma.vmem_to_hbm [thread:$0]  %s1481, 256, %s1483, %s1468, 128, 128, 8
        $region48: #{tpu_custom_call.1} parent=31 // pred_fallthru
          _
      $region32: #{tpu_custom_call.1} parent=5 // pred_fallthru
        _
      %p1489 = scmp.le.s32.totalorder 2, %s16
      // Predicated region
      $region49: #{tpu_custom_call.1} parent=5 // pred_check
        %p1490 = pneg %p1489
      $region50: #{tpu_custom_call.1} parent=5 // pred_check_branch
        %1492 = sbr.rel (%p1490) target = $region52
      $region51: #{tpu_custom_call.1} parent=5 // pred_region
        %s1493 = ssub.s32 %s16, 2
        // Predicated region
        $region53: #{tpu_custom_call.1} parent=51 // pred_check
          %p1494 = pneg %p113
        $region54: #{tpu_custom_call.1} parent=51 // pred_check_branch
          %1496 = sbr.rel (%p1494) target = $region56
        $region55: #{tpu_custom_call.1} parent=51 // pred_region
          %s1497 = sand.u32 %s98, 1
          %s1498 = scalar_lea.sflag [#allocation4], %s1497
          %s1499 = sand.u32 %s98, 1
          %s1500 = smul.addr %s1499, 16
          %s1501 = scalar_lea.vmem [#allocation8], %s1500
          %1503 = dma.done %s1498, 256
        $region56: #{tpu_custom_call.1} parent=51 // pred_fallthru
          _
      $region52: #{tpu_custom_call.1} parent=5 // pred_fallthru
        _
    $region6: #{tpu_custom_call.1} parent=1 // loop_footer
      %s20 = sadd.s32 1, %s16
    $region7: #{tpu_custom_call.1} parent=1 // loop_footer_branch
      %15 = sbr.rel target = $region3
    $region8: #{tpu_custom_call.1} parent=1 // loop_exit
      _
    %1504 = vsyncpa [#allocation3], 1
    %s1505 = scalar_lea.sflag [#allocation3], 1
    %1506 = vsyncpa %s1505, 1
    %1507 = vsyncpa [#allocation6], 1
    %1508 = vsyncpa [#allocation4], 1
    %s1509 = scalar_lea.sflag [#allocation4], 1
    %1510 = vsyncpa %s1509, 1

</llo_original>
